<compile_context>
chip_gen: v5e
topology: v5e:2x2
jax: 0.10.0
libtpu: 0.0.40
codegen_flags: <defaults>
</compile_context>

<pallas_src>
import functools

import jax
import jax.numpy as jnp
from jax.experimental import pallas as pl
from jax.experimental.pallas import tpu as pltpu


def _round_up(v, m):
    return (v + m - 1) // m * m


def _gru_layer_kernel(TT, Hp, x_ref, wih_ref, whh_ref, bias_ref, bhn_ref,
                      out_ref, h_ref):
    """One grid step = TT consecutive time steps for one batch tile of one layer.

    x_ref    : (TT, BB, Din)  bf16   input time-block
    wih_ref  : (Din, 3*Hp)    bf16   W_ih^T, gates laid out as [r | z | n], lane-aligned
    whh_ref  : (Hp,  3*Hp)    bf16   W_hh^T, same gate layout
    bias_ref : (1, 3*Hp)      f32    [b_ir+b_hr | b_iz+b_hz | b_in]
    bhn_ref  : (1, Hp)        f32    b_hn (added inside r*(...))
    out_ref  : (TT, BB, Hp)          per-step hidden output
    h_ref    : (BB, Hp)       f32    resident hidden state (also the final-h output)
    """
    t_blk = pl.program_id(1)

    # h0 = 0 at the start of each batch tile's time sweep; h_ref stays resident
    # in VMEM across the sequential time-block axis.
    @pl.when(t_blk == 0)
    def _():
        h_ref[...] = jnp.zeros_like(h_ref)

    BB = x_ref.shape[1]
    Din = x_ref.shape[2]

    # ---- hoisted input projection: ONE big MXU matmul for all TT steps -------
    x_blk = x_ref[...].astype(jnp.bfloat16).reshape(TT * BB, Din)
    gi_all = jnp.dot(x_blk, wih_ref[...], preferred_element_type=jnp.float32)
    gi_all = (gi_all + bias_ref[...]).reshape(TT, BB, 3 * Hp)

    whh = whh_ref[...]          # (Hp, 3*Hp) bf16
    bhn = bhn_ref[...]          # (1, Hp)    f32

    # ---- serial recurrence: only the small gh matmul + gate math per step ----
    h = h_ref[...]              # (BB, Hp) f32
    for i in range(TT):         # static unroll over the time block
        gi = gi_all[i]                                            # (BB, 3*Hp)
        gh = jnp.dot(h.astype(jnp.bfloat16), whh,
                     preferred_element_type=jnp.float32)          # (BB, 3*Hp)
        # PyTorch GRUCell gate order: r, z, n  (lane-aligned Hp-wide slices)
        r = jax.nn.sigmoid(gi[:, 0:Hp] + gh[:, 0:Hp])
        z = jax.nn.sigmoid(gi[:, Hp:2 * Hp] + gh[:, Hp:2 * Hp])
        n = jnp.tanh(gi[:, 2 * Hp:3 * Hp] + r * (gh[:, 2 * Hp:3 * Hp] + bhn))
        h = (1.0 - z) * n + z * h
        out_ref[i] = h.astype(out_ref.dtype)
    h_ref[...] = h


def _prep_layer_params(wih, whh, bih, bhh, H, Hp, d_in_pad):
    """Transpose, pad each gate to a lane-aligned Hp-wide block, fold biases, cast bf16."""
    d_in = wih.shape[1]

    def pad_gate_cols(w_t):   # (rows, 3H) -> (rows, 3Hp), gate-wise zero padding
        return jnp.concatenate(
            [jnp.pad(w_t[:, k * H:(k + 1) * H], ((0, 0), (0, Hp - H)))
             for k in range(3)], axis=1)

    wih_t = pad_gate_cols(wih.T)                                          # (d_in, 3Hp)
    wih_t = jnp.pad(wih_t, ((0, d_in_pad - d_in), (0, 0))).astype(jnp.bfloat16)
    whh_t = pad_gate_cols(whh.T)                                          # (H, 3Hp)
    whh_t = jnp.pad(whh_t, ((0, Hp - H), (0, 0))).astype(jnp.bfloat16)

    def pad_gate_vec(v):
        return jnp.pad(v, (0, Hp - H))

    b_ir, b_iz, b_in = bih[0:H], bih[H:2 * H], bih[2 * H:3 * H]
    b_hr, b_hz, b_hn = bhh[0:H], bhh[H:2 * H], bhh[2 * H:3 * H]
    bias_comb = jnp.concatenate(
        [pad_gate_vec(b_ir + b_hr), pad_gate_vec(b_iz + b_hz), pad_gate_vec(b_in)]
    ).reshape(1, 3 * Hp).astype(jnp.float32)
    bhn_p = pad_gate_vec(b_hn).reshape(1, Hp).astype(jnp.float32)
    return wih_t, whh_t, bias_comb, bhn_p


def gru_encoder_forward(x, params, hidden_size, *, time_block=8):
    """x: (B, T, D) float32.  params: list of (W_ih, W_hh, b_ih, b_hh) per layer.

    Returns (out, h) with out: (B, T, H), h: (L, B, H)  (matches the PyTorch module).
    """
    B, T, D = x.shape
    L = len(params)
    H = hidden_size

    Hp = _round_up(H, 128)          # lane-aligned gate width
    Dp = _round_up(D, 128)
    Bp = _round_up(B, 16)           # 16 sublanes for bf16 activations

    # time-block size: largest divisor of T that is <= time_block
    TT = min(T, time_block)
    while T % TT:
        TT -= 1
    n_tblk = T // TT

    # split padded batch into 2 tiles when possible -> 'parallel' axis feeds the
    # second TensorCore on v7x; no effect on single-TC chips.
    BB = Bp // 2 if Bp % 32 == 0 else Bp
    n_btile = Bp // BB

    # first-layer input: pad, go time-major once, stream as bf16
    xp = jnp.pad(x, ((0, Bp - B), (0, 0), (0, Dp - D)))
    cur = jnp.transpose(xp, (1, 0, 2)).astype(jnp.bfloat16)       # (T, Bp, Dp)

    h_finals = []
    for j, (wih, whh, bih, bhh) in enumerate(params):
        d_in_pad = cur.shape[-1]                                   # Dp (layer 0) or Hp
        wih_t, whh_t, bias_c, bhn_p = _prep_layer_params(
            wih, whh, bih, bhh, H, Hp, d_in_pad)
        last = (j == L - 1)
        out_dtype = jnp.float32 if last else jnp.bfloat16          # bf16 inter-layer acts

        kernel = functools.partial(_gru_layer_kernel, TT, Hp)
        cur, h_j = pl.pallas_call(
            kernel,
            grid=(n_btile, n_tblk),
            in_specs=[
                pl.BlockSpec((TT, BB, d_in_pad), lambda b, t: (t, b, 0)),
                pl.BlockSpec((d_in_pad, 3 * Hp), lambda b, t: (0, 0)),
                pl.BlockSpec((Hp, 3 * Hp), lambda b, t: (0, 0)),
                pl.BlockSpec((1, 3 * Hp), lambda b, t: (0, 0)),
                pl.BlockSpec((1, Hp), lambda b, t: (0, 0)),
            ],
            out_specs=(
                pl.BlockSpec((TT, BB, Hp), lambda b, t: (t, b, 0)),   # per-step outputs
                pl.BlockSpec((BB, Hp), lambda b, t: (b, 0)),          # resident hidden
            ),
            out_shape=(
                jax.ShapeDtypeStruct((T, Bp, Hp), out_dtype),
                jax.ShapeDtypeStruct((Bp, Hp), jnp.float32),
            ),
            compiler_params=pltpu.CompilerParams(
                dimension_semantics=("parallel", "arbitrary")),
        )(cur, wih_t, whh_t, bias_c, bhn_p)
        h_finals.append(h_j)

    out = jnp.transpose(cur[:, :B, :H], (1, 0, 2)).astype(x.dtype)   # (B, T, H)
    h = jnp.stack(h_finals, axis=0)[:, :B, :H].astype(x.dtype)       # (L, B, H)
    return out, h


def gru_encoder_reference(x, params, hidden_size):
    """Pure-JAX f32 reference mirroring the PyTorch forward loop exactly."""
    B, T, _ = x.shape
    L = len(params)
    H = hidden_size
    h_in = [jnp.zeros((B, H), x.dtype) for _ in range(L)]
    outs = []
    for i in range(T):
        h_i = x[:, i, :]
        for j, (wih, whh, bih, bhh) in enumerate(params):
            hp = h_in[j]
            gi = h_i @ wih.T + bih
            gh = hp @ whh.T + bhh
            r = jax.nn.sigmoid(gi[:, :H] + gh[:, :H])
            z = jax.nn.sigmoid(gi[:, H:2 * H] + gh[:, H:2 * H])
            n = jnp.tanh(gi[:, 2 * H:] + r * gh[:, 2 * H:])
            h_i = (1.0 - z) * n + z * hp
            h_in[j] = h_i
        outs.append(h_i)
    return jnp.stack(outs, axis=1), jnp.stack(h_in, axis=0)


def init_params(key, input_size, hidden_size, num_layers):
    """Deterministic GRUCell params, PyTorch-style uniform(-1/sqrt(H), 1/sqrt(H))."""
    params = []
    bound = 1.0 / float(hidden_size) ** 0.5
    d = input_size
    for _ in range(num_layers):
        key, k1, k2, k3, k4 = jax.random.split(key, 5)
        wih = jax.random.uniform(k1, (3 * hidden_size, d), jnp.float32, -bound, bound)
        whh = jax.random.uniform(k2, (3 * hidden_size, hidden_size), jnp.float32, -bound, bound)
        bih = jax.random.uniform(k3, (3 * hidden_size,), jnp.float32, -bound, bound)
        bhh = jax.random.uniform(k4, (3 * hidden_size,), jnp.float32, -bound, bound)
        params.append((wih, whh, bih, bhh))
        d = hidden_size
    return params


if __name__ == "__main__":
    B, T, D, H, L = 2, 8, 16, 32, 2

    key = jax.random.PRNGKey(0)
    key, kx = jax.random.split(key)
    x = jax.random.normal(kx, (B, T, D), dtype=jnp.float32)
    params = init_params(key, D, H, L)

    out, h = gru_encoder_forward(x, params, H)
    out = jax.block_until_ready(out)
    h = jax.block_until_ready(h)

    out_exp, h_exp = gru_encoder_reference(x, params, H)
    assert out.shape == (B, T, H) and h.shape == (L, B, H)
    # Tolerance loosened for bf16 MXU inputs (accumulation stays f32).
    assert jnp.allclose(out, out_exp, rtol=5e-2, atol=5e-2)
    assert jnp.allclose(h, h_exp, rtol=5e-2, atol=5e-2)

    print("KERNEL_OK")
</pallas_src>

<mosaic_0001>
module attributes {stable_mosaic.version = 11 : i64} {
  func.func @_gru_layer_kernel(%arg0: i32, %arg1: i32, %arg2: memref<8x16x128xbf16, #tpu.memory_space<vmem>>, %arg3: memref<128x384xbf16, #tpu.memory_space<vmem>>, %arg4: memref<128x384xbf16, #tpu.memory_space<vmem>>, %arg5: memref<1x384xf32, #tpu.memory_space<vmem>>, %arg6: memref<1x128xf32, #tpu.memory_space<vmem>>, %arg7: memref<8x16x128xbf16, #tpu.memory_space<vmem>>, %arg8: memref<16x128xf32, #tpu.memory_space<vmem>>) attributes {dimension_semantics = [#tpu.dimension_semantics<parallel>, #tpu.dimension_semantics<arbitrary>], iteration_bounds = array<i64: 1, 1>, scalar_prefetch = 0 : i64, scratch_operands = 0 : i64, tpu.core_type = #tpu.core_type<tc>, window_params = [{transform_indices = @transform_0, window_bounds = array<i64: 8, 16, 128>}, {pipeline_mode = #tpu.pipeline_mode<synchronous>, transform_indices = @transform_1, window_bounds = array<i64: 128, 384>}, {pipeline_mode = #tpu.pipeline_mode<synchronous>, transform_indices = @transform_2, window_bounds = array<i64: 128, 384>}, {pipeline_mode = #tpu.pipeline_mode<synchronous>, transform_indices = @transform_3, window_bounds = array<i64: 1, 384>}, {pipeline_mode = #tpu.pipeline_mode<synchronous>, transform_indices = @transform_4, window_bounds = array<i64: 1, 128>}, {transform_indices = @transform_5, window_bounds = array<i64: 8, 16, 128>}, {transform_indices = @transform_6, window_bounds = array<i64: 16, 128>}]} {
    %c0_i32 = arith.constant 0 : i32
    %0 = arith.cmpi eq, %arg1, %c0_i32 : i32
    %1 = arith.extui %0 : i1 to i32
    %c0_i32_0 = arith.constant 0 : i32
    %2 = arith.cmpi ne, %1, %c0_i32_0 : i32
    scf.if %2 {
      %cst_64 = arith.constant 0.000000e+00 : f32
      %303 = vector.broadcast %cst_64 : f32 to vector<16x128xf32>
      %c0_65 = arith.constant 0 : index
      %c0_66 = arith.constant 0 : index
      %304 = vector.load %arg8[%c0_65, %c0_66] : memref<16x128xf32, #tpu.memory_space<vmem>>, vector<16x128xf32>
      tpu.vector_store %arg8[%c0_65, %c0_66], %303 {strides = array<i32>} : memref<16x128xf32, #tpu.memory_space<vmem>>, vector<16x128xf32>,
    } else {
    }
    %c0 = arith.constant 0 : index
    %c0_1 = arith.constant 0 : index
    %c0_2 = arith.constant 0 : index
    %3 = vector.load %arg2[%c0, %c0_1, %c0_2] : memref<8x16x128xbf16, #tpu.memory_space<vmem>>, vector<8x16x128xbf16>
    %4 = vector.shape_cast %3 : vector<8x16x128xbf16> to vector<128x128xbf16>
    %c0_3 = arith.constant 0 : index
    %c0_4 = arith.constant 0 : index
    %5 = vector.load %arg3[%c0_3, %c0_4] : memref<128x384xbf16, #tpu.memory_space<vmem>>, vector<128x384xbf16>
    %cst = arith.constant dense<0.000000e+00> : vector<128x384xf32>
    %6 = tpu.matmul %4, %5, %cst {dimension_numbers = #tpu.dot_dimension_numbers<[1], [0], [0], [1], [0, 0, 1, 1], [], []>} : vector<128x128xbf16>, vector<128x384xbf16>, vector<128x384xf32> -> vector<128x384xf32>
    %c0_5 = arith.constant 0 : index
    %c0_6 = arith.constant 0 : index
    %7 = vector.load %arg5[%c0_5, %c0_6] : memref<1x384xf32, #tpu.memory_space<vmem>>, vector<1x384xf32>
    %8 = vector.broadcast %7 : vector<1x384xf32> to vector<128x384xf32>
    %9 = arith.addf %6, %8 : vector<128x384xf32>
    %10 = vector.shape_cast %9 : vector<128x384xf32> to vector<8x16x384xf32>
    %c0_7 = arith.constant 0 : index
    %c0_8 = arith.constant 0 : index
    %11 = vector.load %arg4[%c0_7, %c0_8] : memref<128x384xbf16, #tpu.memory_space<vmem>>, vector<128x384xbf16>
    %c0_9 = arith.constant 0 : index
    %c0_10 = arith.constant 0 : index
    %12 = vector.load %arg6[%c0_9, %c0_10] : memref<1x128xf32, #tpu.memory_space<vmem>>, vector<1x128xf32>
    %c0_11 = arith.constant 0 : index
    %c0_12 = arith.constant 0 : index
    %13 = vector.load %arg8[%c0_11, %c0_12] : memref<16x128xf32, #tpu.memory_space<vmem>>, vector<16x128xf32>
    %14 = vector.extract_strided_slice %10 {offsets = [0, 0, 0], sizes = [1, 16, 384], strides = [1, 1, 1]} : vector<8x16x384xf32> to vector<1x16x384xf32>
    %15 = vector.shape_cast %14 : vector<1x16x384xf32> to vector<16x384xf32>
    %16 = arith.truncf %13 : vector<16x128xf32> to vector<16x128xbf16>
    %cst_13 = arith.constant dense<0.000000e+00> : vector<16x384xf32>
    %17 = tpu.matmul %16, %11, %cst_13 {dimension_numbers = #tpu.dot_dimension_numbers<[1], [0], [0], [1], [0, 0, 1, 1], [], []>} : vector<16x128xbf16>, vector<128x384xbf16>, vector<16x384xf32> -> vector<16x384xf32>
    %18 = vector.extract_strided_slice %15 {offsets = [0, 0], sizes = [16, 128], strides = [1, 1]} : vector<16x384xf32> to vector<16x128xf32>
    %19 = vector.extract_strided_slice %17 {offsets = [0, 0], sizes = [16, 128], strides = [1, 1]} : vector<16x384xf32> to vector<16x128xf32>
    %20 = arith.addf %18, %19 : vector<16x128xf32>
    %21 = arith.negf %20 : vector<16x128xf32>
    %22 = math.exp %21 : vector<16x128xf32>
    %cst_14 = arith.constant 1.000000e+00 : f32
    %23 = vector.broadcast %cst_14 : f32 to vector<16x128xf32>
    %24 = arith.addf %23, %22 : vector<16x128xf32>
    %25 = arith.divf %23, %24 : vector<16x128xf32>
    %26 = vector.extract_strided_slice %15 {offsets = [0, 128], sizes = [16, 128], strides = [1, 1]} : vector<16x384xf32> to vector<16x128xf32>
    %27 = vector.extract_strided_slice %17 {offsets = [0, 128], sizes = [16, 128], strides = [1, 1]} : vector<16x384xf32> to vector<16x128xf32>
    %28 = arith.addf %26, %27 : vector<16x128xf32>
    %29 = arith.negf %28 : vector<16x128xf32>
    %30 = math.exp %29 : vector<16x128xf32>
    %cst_15 = arith.constant 1.000000e+00 : f32
    %31 = vector.broadcast %cst_15 : f32 to vector<16x128xf32>
    %32 = arith.addf %31, %30 : vector<16x128xf32>
    %33 = arith.divf %31, %32 : vector<16x128xf32>
    %34 = vector.extract_strided_slice %15 {offsets = [0, 256], sizes = [16, 128], strides = [1, 1]} : vector<16x384xf32> to vector<16x128xf32>
    %35 = vector.extract_strided_slice %17 {offsets = [0, 256], sizes = [16, 128], strides = [1, 1]} : vector<16x384xf32> to vector<16x128xf32>
    %36 = vector.broadcast %12 : vector<1x128xf32> to vector<16x128xf32>
    %37 = arith.addf %35, %36 : vector<16x128xf32>
    %38 = arith.mulf %25, %37 : vector<16x128xf32>
    %39 = arith.addf %34, %38 : vector<16x128xf32>
    %40 = math.tanh %39 : vector<16x128xf32>
    %cst_16 = arith.constant 1.000000e+00 : f32
    %41 = vector.broadcast %cst_16 : f32 to vector<16x128xf32>
    %42 = arith.subf %41, %33 : vector<16x128xf32>
    %43 = arith.mulf %42, %40 : vector<16x128xf32>
    %44 = arith.mulf %33, %13 : vector<16x128xf32>
    %45 = arith.addf %43, %44 : vector<16x128xf32>
    %46 = arith.truncf %45 : vector<16x128xf32> to vector<16x128xbf16>
    %c0_17 = arith.constant 0 : index
    %c0_18 = arith.constant 0 : index
    %c0_19 = arith.constant 0 : index
    %47 = vector.load %arg7[%c0_17, %c0_18, %c0_19] : memref<8x16x128xbf16, #tpu.memory_space<vmem>>, vector<1x16x128xbf16>
    %48 = vector.shape_cast %47 : vector<1x16x128xbf16> to vector<16x128xbf16>
    %49 = vector.shape_cast %46 : vector<16x128xbf16> to vector<1x16x128xbf16>
    tpu.vector_store %arg7[%c0_17, %c0_18, %c0_19], %49 {strides = array<i32>} : memref<8x16x128xbf16, #tpu.memory_space<vmem>>, vector<1x16x128xbf16>,
    %50 = vector.extract_strided_slice %10 {offsets = [1, 0, 0], sizes = [1, 16, 384], strides = [1, 1, 1]} : vector<8x16x384xf32> to vector<1x16x384xf32>
    %51 = vector.shape_cast %50 : vector<1x16x384xf32> to vector<16x384xf32>
    %52 = arith.truncf %45 : vector<16x128xf32> to vector<16x128xbf16>
    %cst_20 = arith.constant dense<0.000000e+00> : vector<16x384xf32>
    %53 = tpu.matmul %52, %11, %cst_20 {dimension_numbers = #tpu.dot_dimension_numbers<[1], [0], [0], [1], [0, 0, 1, 1], [], []>} : vector<16x128xbf16>, vector<128x384xbf16>, vector<16x384xf32> -> vector<16x384xf32>
    %54 = vector.extract_strided_slice %51 {offsets = [0, 0], sizes = [16, 128], strides = [1, 1]} : vector<16x384xf32> to vector<16x128xf32>
    %55 = vector.extract_strided_slice %53 {offsets = [0, 0], sizes = [16, 128], strides = [1, 1]} : vector<16x384xf32> to vector<16x128xf32>
    %56 = arith.addf %54, %55 : vector<16x128xf32>
    %57 = arith.negf %56 : vector<16x128xf32>
    %58 = math.exp %57 : vector<16x128xf32>
    %cst_21 = arith.constant 1.000000e+00 : f32
    %59 = vector.broadcast %cst_21 : f32 to vector<16x128xf32>
    %60 = arith.addf %59, %58 : vector<16x128xf32>
    %61 = arith.divf %59, %60 : vector<16x128xf32>
    %62 = vector.extract_strided_slice %51 {offsets = [0, 128], sizes = [16, 128], strides = [1, 1]} : vector<16x384xf32> to vector<16x128xf32>
    %63 = vector.extract_strided_slice %53 {offsets = [0, 128], sizes = [16, 128], strides = [1, 1]} : vector<16x384xf32> to vector<16x128xf32>
    %64 = arith.addf %62, %63 : vector<16x128xf32>
    %65 = arith.negf %64 : vector<16x128xf32>
    %66 = math.exp %65 : vector<16x128xf32>
    %cst_22 = arith.constant 1.000000e+00 : f32
    %67 = vector.broadcast %cst_22 : f32 to vector<16x128xf32>
    %68 = arith.addf %67, %66 : vector<16x128xf32>
    %69 = arith.divf %67, %68 : vector<16x128xf32>
    %70 = vector.extract_strided_slice %51 {offsets = [0, 256], sizes = [16, 128], strides = [1, 1]} : vector<16x384xf32> to vector<16x128xf32>
    %71 = vector.extract_strided_slice %53 {offsets = [0, 256], sizes = [16, 128], strides = [1, 1]} : vector<16x384xf32> to vector<16x128xf32>
    %72 = vector.broadcast %12 : vector<1x128xf32> to vector<16x128xf32>
    %73 = arith.addf %71, %72 : vector<16x128xf32>
    %74 = arith.mulf %61, %73 : vector<16x128xf32>
    %75 = arith.addf %70, %74 : vector<16x128xf32>
    %76 = math.tanh %75 : vector<16x128xf32>
    %cst_23 = arith.constant 1.000000e+00 : f32
    %77 = vector.broadcast %cst_23 : f32 to vector<16x128xf32>
    %78 = arith.subf %77, %69 : vector<16x128xf32>
    %79 = arith.mulf %78, %76 : vector<16x128xf32>
    %80 = arith.mulf %69, %45 : vector<16x128xf32>
    %81 = arith.addf %79, %80 : vector<16x128xf32>
    %82 = arith.truncf %81 : vector<16x128xf32> to vector<16x128xbf16>
    %c1 = arith.constant 1 : index
    %c0_24 = arith.constant 0 : index
    %c0_25 = arith.constant 0 : index
    %83 = vector.load %arg7[%c1, %c0_24, %c0_25] : memref<8x16x128xbf16, #tpu.memory_space<vmem>>, vector<1x16x128xbf16>
    %84 = vector.shape_cast %83 : vector<1x16x128xbf16> to vector<16x128xbf16>
    %85 = vector.shape_cast %82 : vector<16x128xbf16> to vector<1x16x128xbf16>
    tpu.vector_store %arg7[%c1, %c0_24, %c0_25], %85 {strides = array<i32>} : memref<8x16x128xbf16, #tpu.memory_space<vmem>>, vector<1x16x128xbf16>,
    %86 = vector.extract_strided_slice %10 {offsets = [2, 0, 0], sizes = [1, 16, 384], strides = [1, 1, 1]} : vector<8x16x384xf32> to vector<1x16x384xf32>
    %87 = vector.shape_cast %86 : vector<1x16x384xf32> to vector<16x384xf32>
    %88 = arith.truncf %81 : vector<16x128xf32> to vector<16x128xbf16>
    %cst_26 = arith.constant dense<0.000000e+00> : vector<16x384xf32>
    %89 = tpu.matmul %88, %11, %cst_26 {dimension_numbers = #tpu.dot_dimension_numbers<[1], [0], [0], [1], [0, 0, 1, 1], [], []>} : vector<16x128xbf16>, vector<128x384xbf16>, vector<16x384xf32> -> vector<16x384xf32>
    %90 = vector.extract_strided_slice %87 {offsets = [0, 0], sizes = [16, 128], strides = [1, 1]} : vector<16x384xf32> to vector<16x128xf32>
    %91 = vector.extract_strided_slice %89 {offsets = [0, 0], sizes = [16, 128], strides = [1, 1]} : vector<16x384xf32> to vector<16x128xf32>
    %92 = arith.addf %90, %91 : vector<16x128xf32>
    %93 = arith.negf %92 : vector<16x128xf32>
    %94 = math.exp %93 : vector<16x128xf32>
    %cst_27 = arith.constant 1.000000e+00 : f32
    %95 = vector.broadcast %cst_27 : f32 to vector<16x128xf32>
    %96 = arith.addf %95, %94 : vector<16x128xf32>
    %97 = arith.divf %95, %96 : vector<16x128xf32>
    %98 = vector.extract_strided_slice %87 {offsets = [0, 128], sizes = [16, 128], strides = [1, 1]} : vector<16x384xf32> to vector<16x128xf32>
    %99 = vector.extract_strided_slice %89 {offsets = [0, 128], sizes = [16, 128], strides = [1, 1]} : vector<16x384xf32> to vector<16x128xf32>
    %100 = arith.addf %98, %99 : vector<16x128xf32>
    %101 = arith.negf %100 : vector<16x128xf32>
    %102 = math.exp %101 : vector<16x128xf32>
    %cst_28 = arith.constant 1.000000e+00 : f32
    %103 = vector.broadcast %cst_28 : f32 to vector<16x128xf32>
    %104 = arith.addf %103, %102 : vector<16x128xf32>
    %105 = arith.divf %103, %104 : vector<16x128xf32>
    %106 = vector.extract_strided_slice %87 {offsets = [0, 256], sizes = [16, 128], strides = [1, 1]} : vector<16x384xf32> to vector<16x128xf32>
    %107 = vector.extract_strided_slice %89 {offsets = [0, 256], sizes = [16, 128], strides = [1, 1]} : vector<16x384xf32> to vector<16x128xf32>
    %108 = vector.broadcast %12 : vector<1x128xf32> to vector<16x128xf32>
    %109 = arith.addf %107, %108 : vector<16x128xf32>
    %110 = arith.mulf %97, %109 : vector<16x128xf32>
    %111 = arith.addf %106, %110 : vector<16x128xf32>
    %112 = math.tanh %111 : vector<16x128xf32>
    %cst_29 = arith.constant 1.000000e+00 : f32
    %113 = vector.broadcast %cst_29 : f32 to vector<16x128xf32>
    %114 = arith.subf %113, %105 : vector<16x128xf32>
    %115 = arith.mulf %114, %112 : vector<16x128xf32>
    %116 = arith.mulf %105, %81 : vector<16x128xf32>
    %117 = arith.addf %115, %116 : vector<16x128xf32>
    %118 = arith.truncf %117 : vector<16x128xf32> to vector<16x128xbf16>
    %c2 = arith.constant 2 : index
    %c0_30 = arith.constant 0 : index
    %c0_31 = arith.constant 0 : index
    %119 = vector.load %arg7[%c2, %c0_30, %c0_31] : memref<8x16x128xbf16, #tpu.memory_space<vmem>>, vector<1x16x128xbf16>
    %120 = vector.shape_cast %119 : vector<1x16x128xbf16> to vector<16x128xbf16>
    %121 = vector.shape_cast %118 : vector<16x128xbf16> to vector<1x16x128xbf16>
    tpu.vector_store %arg7[%c2, %c0_30, %c0_31], %121 {strides = array<i32>} : memref<8x16x128xbf16, #tpu.memory_space<vmem>>, vector<1x16x128xbf16>,
    %122 = vector.extract_strided_slice %10 {offsets = [3, 0, 0], sizes = [1, 16, 384], strides = [1, 1, 1]} : vector<8x16x384xf32> to vector<1x16x384xf32>
    %123 = vector.shape_cast %122 : vector<1x16x384xf32> to vector<16x384xf32>
    %124 = arith.truncf %117 : vector<16x128xf32> to vector<16x128xbf16>
    %cst_32 = arith.constant dense<0.000000e+00> : vector<16x384xf32>
    %125 = tpu.matmul %124, %11, %cst_32 {dimension_numbers = #tpu.dot_dimension_numbers<[1], [0], [0], [1], [0, 0, 1, 1], [], []>} : vector<16x128xbf16>, vector<128x384xbf16>, vector<16x384xf32> -> vector<16x384xf32>
    %126 = vector.extract_strided_slice %123 {offsets = [0, 0], sizes = [16, 128], strides = [1, 1]} : vector<16x384xf32> to vector<16x128xf32>
    %127 = vector.extract_strided_slice %125 {offsets = [0, 0], sizes = [16, 128], strides = [1, 1]} : vector<16x384xf32> to vector<16x128xf32>
    %128 = arith.addf %126, %127 : vector<16x128xf32>
    %129 = arith.negf %128 : vector<16x128xf32>
    %130 = math.exp %129 : vector<16x128xf32>
    %cst_33 = arith.constant 1.000000e+00 : f32
    %131 = vector.broadcast %cst_33 : f32 to vector<16x128xf32>
    %132 = arith.addf %131, %130 : vector<16x128xf32>
    %133 = arith.divf %131, %132 : vector<16x128xf32>
    %134 = vector.extract_strided_slice %123 {offsets = [0, 128], sizes = [16, 128], strides = [1, 1]} : vector<16x384xf32> to vector<16x128xf32>
    %135 = vector.extract_strided_slice %125 {offsets = [0, 128], sizes = [16, 128], strides = [1, 1]} : vector<16x384xf32> to vector<16x128xf32>
    %136 = arith.addf %134, %135 : vector<16x128xf32>
    %137 = arith.negf %136 : vector<16x128xf32>
    %138 = math.exp %137 : vector<16x128xf32>
    %cst_34 = arith.constant 1.000000e+00 : f32
    %139 = vector.broadcast %cst_34 : f32 to vector<16x128xf32>
    %140 = arith.addf %139, %138 : vector<16x128xf32>
    %141 = arith.divf %139, %140 : vector<16x128xf32>
    %142 = vector.extract_strided_slice %123 {offsets = [0, 256], sizes = [16, 128], strides = [1, 1]} : vector<16x384xf32> to vector<16x128xf32>
    %143 = vector.extract_strided_slice %125 {offsets = [0, 256], sizes = [16, 128], strides = [1, 1]} : vector<16x384xf32> to vector<16x128xf32>
    %144 = vector.broadcast %12 : vector<1x128xf32> to vector<16x128xf32>
    %145 = arith.addf %143, %144 : vector<16x128xf32>
    %146 = arith.mulf %133, %145 : vector<16x128xf32>
    %147 = arith.addf %142, %146 : vector<16x128xf32>
    %148 = math.tanh %147 : vector<16x128xf32>
    %cst_35 = arith.constant 1.000000e+00 : f32
    %149 = vector.broadcast %cst_35 : f32 to vector<16x128xf32>
    %150 = arith.subf %149, %141 : vector<16x128xf32>
    %151 = arith.mulf %150, %148 : vector<16x128xf32>
    %152 = arith.mulf %141, %117 : vector<16x128xf32>
    %153 = arith.addf %151, %152 : vector<16x128xf32>
    %154 = arith.truncf %153 : vector<16x128xf32> to vector<16x128xbf16>
    %c3 = arith.constant 3 : index
    %c0_36 = arith.constant 0 : index
    %c0_37 = arith.constant 0 : index
    %155 = vector.load %arg7[%c3, %c0_36, %c0_37] : memref<8x16x128xbf16, #tpu.memory_space<vmem>>, vector<1x16x128xbf16>
    %156 = vector.shape_cast %155 : vector<1x16x128xbf16> to vector<16x128xbf16>
    %157 = vector.shape_cast %154 : vector<16x128xbf16> to vector<1x16x128xbf16>
    tpu.vector_store %arg7[%c3, %c0_36, %c0_37], %157 {strides = array<i32>} : memref<8x16x128xbf16, #tpu.memory_space<vmem>>, vector<1x16x128xbf16>,
    %158 = vector.extract_strided_slice %10 {offsets = [4, 0, 0], sizes = [1, 16, 384], strides = [1, 1, 1]} : vector<8x16x384xf32> to vector<1x16x384xf32>
    %159 = vector.shape_cast %158 : vector<1x16x384xf32> to vector<16x384xf32>
    %160 = arith.truncf %153 : vector<16x128xf32> to vector<16x128xbf16>
    %cst_38 = arith.constant dense<0.000000e+00> : vector<16x384xf32>
    %161 = tpu.matmul %160, %11, %cst_38 {dimension_numbers = #tpu.dot_dimension_numbers<[1], [0], [0], [1], [0, 0, 1, 1], [], []>} : vector<16x128xbf16>, vector<128x384xbf16>, vector<16x384xf32> -> vector<16x384xf32>
    %162 = vector.extract_strided_slice %159 {offsets = [0, 0], sizes = [16, 128], strides = [1, 1]} : vector<16x384xf32> to vector<16x128xf32>
    %163 = vector.extract_strided_slice %161 {offsets = [0, 0], sizes = [16, 128], strides = [1, 1]} : vector<16x384xf32> to vector<16x128xf32>
    %164 = arith.addf %162, %163 : vector<16x128xf32>
    %165 = arith.negf %164 : vector<16x128xf32>
    %166 = math.exp %165 : vector<16x128xf32>
    %cst_39 = arith.constant 1.000000e+00 : f32
    %167 = vector.broadcast %cst_39 : f32 to vector<16x128xf32>
    %168 = arith.addf %167, %166 : vector<16x128xf32>
    %169 = arith.divf %167, %168 : vector<16x128xf32>
    %170 = vector.extract_strided_slice %159 {offsets = [0, 128], sizes = [16, 128], strides = [1, 1]} : vector<16x384xf32> to vector<16x128xf32>
    %171 = vector.extract_strided_slice %161 {offsets = [0, 128], sizes = [16, 128], strides = [1, 1]} : vector<16x384xf32> to vector<16x128xf32>
    %172 = arith.addf %170, %171 : vector<16x128xf32>
    %173 = arith.negf %172 : vector<16x128xf32>
    %174 = math.exp %173 : vector<16x128xf32>
    %cst_40 = arith.constant 1.000000e+00 : f32
    %175 = vector.broadcast %cst_40 : f32 to vector<16x128xf32>
    %176 = arith.addf %175, %174 : vector<16x128xf32>
    %177 = arith.divf %175, %176 : vector<16x128xf32>
    %178 = vector.extract_strided_slice %159 {offsets = [0, 256], sizes = [16, 128], strides = [1, 1]} : vector<16x384xf32> to vector<16x128xf32>
    %179 = vector.extract_strided_slice %161 {offsets = [0, 256], sizes = [16, 128], strides = [1, 1]} : vector<16x384xf32> to vector<16x128xf32>
    %180 = vector.broadcast %12 : vector<1x128xf32> to vector<16x128xf32>
    %181 = arith.addf %179, %180 : vector<16x128xf32>
    %182 = arith.mulf %169, %181 : vector<16x128xf32>
    %183 = arith.addf %178, %182 : vector<16x128xf32>
    %184 = math.tanh %183 : vector<16x128xf32>
    %cst_41 = arith.constant 1.000000e+00 : f32
    %185 = vector.broadcast %cst_41 : f32 to vector<16x128xf32>
    %186 = arith.subf %185, %177 : vector<16x128xf32>
    %187 = arith.mulf %186, %184 : vector<16x128xf32>
    %188 = arith.mulf %177, %153 : vector<16x128xf32>
    %189 = arith.addf %187, %188 : vector<16x128xf32>
    %190 = arith.truncf %189 : vector<16x128xf32> to vector<16x128xbf16>
    %c4 = arith.constant 4 : index
    %c0_42 = arith.constant 0 : index
    %c0_43 = arith.constant 0 : index
    %191 = vector.load %arg7[%c4, %c0_42, %c0_43] : memref<8x16x128xbf16, #tpu.memory_space<vmem>>, vector<1x16x128xbf16>
    %192 = vector.shape_cast %191 : vector<1x16x128xbf16> to vector<16x128xbf16>
    %193 = vector.shape_cast %190 : vector<16x128xbf16> to vector<1x16x128xbf16>
    tpu.vector_store %arg7[%c4, %c0_42, %c0_43], %193 {strides = array<i32>} : memref<8x16x128xbf16, #tpu.memory_space<vmem>>, vector<1x16x128xbf16>,
    %194 = vector.extract_strided_slice %10 {offsets = [5, 0, 0], sizes = [1, 16, 384], strides = [1, 1, 1]} : vector<8x16x384xf32> to vector<1x16x384xf32>
    %195 = vector.shape_cast %194 : vector<1x16x384xf32> to vector<16x384xf32>
    %196 = arith.truncf %189 : vector<16x128xf32> to vector<16x128xbf16>
    %cst_44 = arith.constant dense<0.000000e+00> : vector<16x384xf32>
    %197 = tpu.matmul %196, %11, %cst_44 {dimension_numbers = #tpu.dot_dimension_numbers<[1], [0], [0], [1], [0, 0, 1, 1], [], []>} : vector<16x128xbf16>, vector<128x384xbf16>, vector<16x384xf32> -> vector<16x384xf32>
    %198 = vector.extract_strided_slice %195 {offsets = [0, 0], sizes = [16, 128], strides = [1, 1]} : vector<16x384xf32> to vector<16x128xf32>
    %199 = vector.extract_strided_slice %197 {offsets = [0, 0], sizes = [16, 128], strides = [1, 1]} : vector<16x384xf32> to vector<16x128xf32>
    %200 = arith.addf %198, %199 : vector<16x128xf32>
    %201 = arith.negf %200 : vector<16x128xf32>
    %202 = math.exp %201 : vector<16x128xf32>
    %cst_45 = arith.constant 1.000000e+00 : f32
    %203 = vector.broadcast %cst_45 : f32 to vector<16x128xf32>
    %204 = arith.addf %203, %202 : vector<16x128xf32>
    %205 = arith.divf %203, %204 : vector<16x128xf32>
    %206 = vector.extract_strided_slice %195 {offsets = [0, 128], sizes = [16, 128], strides = [1, 1]} : vector<16x384xf32> to vector<16x128xf32>
    %207 = vector.extract_strided_slice %197 {offsets = [0, 128], sizes = [16, 128], strides = [1, 1]} : vector<16x384xf32> to vector<16x128xf32>
    %208 = arith.addf %206, %207 : vector<16x128xf32>
    %209 = arith.negf %208 : vector<16x128xf32>
    %210 = math.exp %209 : vector<16x128xf32>
    %cst_46 = arith.constant 1.000000e+00 : f32
    %211 = vector.broadcast %cst_46 : f32 to vector<16x128xf32>
    %212 = arith.addf %211, %210 : vector<16x128xf32>
    %213 = arith.divf %211, %212 : vector<16x128xf32>
    %214 = vector.extract_strided_slice %195 {offsets = [0, 256], sizes = [16, 128], strides = [1, 1]} : vector<16x384xf32> to vector<16x128xf32>
    %215 = vector.extract_strided_slice %197 {offsets = [0, 256], sizes = [16, 128], strides = [1, 1]} : vector<16x384xf32> to vector<16x128xf32>
    %216 = vector.broadcast %12 : vector<1x128xf32> to vector<16x128xf32>
    %217 = arith.addf %215, %216 : vector<16x128xf32>
    %218 = arith.mulf %205, %217 : vector<16x128xf32>
    %219 = arith.addf %214, %218 : vector<16x128xf32>
    %220 = math.tanh %219 : vector<16x128xf32>
    %cst_47 = arith.constant 1.000000e+00 : f32
    %221 = vector.broadcast %cst_47 : f32 to vector<16x128xf32>
    %222 = arith.subf %221, %213 : vector<16x128xf32>
    %223 = arith.mulf %222, %220 : vector<16x128xf32>
    %224 = arith.mulf %213, %189 : vector<16x128xf32>
    %225 = arith.addf %223, %224 : vector<16x128xf32>
    %226 = arith.truncf %225 : vector<16x128xf32> to vector<16x128xbf16>
    %c5 = arith.constant 5 : index
    %c0_48 = arith.constant 0 : index
    %c0_49 = arith.constant 0 : index
    %227 = vector.load %arg7[%c5, %c0_48, %c0_49] : memref<8x16x128xbf16, #tpu.memory_space<vmem>>, vector<1x16x128xbf16>
    %228 = vector.shape_cast %227 : vector<1x16x128xbf16> to vector<16x128xbf16>
    %229 = vector.shape_cast %226 : vector<16x128xbf16> to vector<1x16x128xbf16>
    tpu.vector_store %arg7[%c5, %c0_48, %c0_49], %229 {strides = array<i32>} : memref<8x16x128xbf16, #tpu.memory_space<vmem>>, vector<1x16x128xbf16>,
    %230 = vector.extract_strided_slice %10 {offsets = [6, 0, 0], sizes = [1, 16, 384], strides = [1, 1, 1]} : vector<8x16x384xf32> to vector<1x16x384xf32>
    %231 = vector.shape_cast %230 : vector<1x16x384xf32> to vector<16x384xf32>
    %232 = arith.truncf %225 : vector<16x128xf32> to vector<16x128xbf16>
    %cst_50 = arith.constant dense<0.000000e+00> : vector<16x384xf32>
    %233 = tpu.matmul %232, %11, %cst_50 {dimension_numbers = #tpu.dot_dimension_numbers<[1], [0], [0], [1], [0, 0, 1, 1], [], []>} : vector<16x128xbf16>, vector<128x384xbf16>, vector<16x384xf32> -> vector<16x384xf32>
    %234 = vector.extract_strided_slice %231 {offsets = [0, 0], sizes = [16, 128], strides = [1, 1]} : vector<16x384xf32> to vector<16x128xf32>
    %235 = vector.extract_strided_slice %233 {offsets = [0, 0], sizes = [16, 128], strides = [1, 1]} : vector<16x384xf32> to vector<16x128xf32>
    %236 = arith.addf %234, %235 : vector<16x128xf32>
    %237 = arith.negf %236 : vector<16x128xf32>
    %238 = math.exp %237 : vector<16x128xf32>
    %cst_51 = arith.constant 1.000000e+00 : f32
    %239 = vector.broadcast %cst_51 : f32 to vector<16x128xf32>
    %240 = arith.addf %239, %238 : vector<16x128xf32>
    %241 = arith.divf %239, %240 : vector<16x128xf32>
    %242 = vector.extract_strided_slice %231 {offsets = [0, 128], sizes = [16, 128], strides = [1, 1]} : vector<16x384xf32> to vector<16x128xf32>
    %243 = vector.extract_strided_slice %233 {offsets = [0, 128], sizes = [16, 128], strides = [1, 1]} : vector<16x384xf32> to vector<16x128xf32>
    %244 = arith.addf %242, %243 : vector<16x128xf32>
    %245 = arith.negf %244 : vector<16x128xf32>
    %246 = math.exp %245 : vector<16x128xf32>
    %cst_52 = arith.constant 1.000000e+00 : f32
    %247 = vector.broadcast %cst_52 : f32 to vector<16x128xf32>
    %248 = arith.addf %247, %246 : vector<16x128xf32>
    %249 = arith.divf %247, %248 : vector<16x128xf32>
    %250 = vector.extract_strided_slice %231 {offsets = [0, 256], sizes = [16, 128], strides = [1, 1]} : vector<16x384xf32> to vector<16x128xf32>
    %251 = vector.extract_strided_slice %233 {offsets = [0, 256], sizes = [16, 128], strides = [1, 1]} : vector<16x384xf32> to vector<16x128xf32>
    %252 = vector.broadcast %12 : vector<1x128xf32> to vector<16x128xf32>
    %253 = arith.addf %251, %252 : vector<16x128xf32>
    %254 = arith.mulf %241, %253 : vector<16x128xf32>
    %255 = arith.addf %250, %254 : vector<16x128xf32>
    %256 = math.tanh %255 : vector<16x128xf32>
    %cst_53 = arith.constant 1.000000e+00 : f32
    %257 = vector.broadcast %cst_53 : f32 to vector<16x128xf32>
    %258 = arith.subf %257, %249 : vector<16x128xf32>
    %259 = arith.mulf %258, %256 : vector<16x128xf32>
    %260 = arith.mulf %249, %225 : vector<16x128xf32>
    %261 = arith.addf %259, %260 : vector<16x128xf32>
    %262 = arith.truncf %261 : vector<16x128xf32> to vector<16x128xbf16>
    %c6 = arith.constant 6 : index
    %c0_54 = arith.constant 0 : index
    %c0_55 = arith.constant 0 : index
    %263 = vector.load %arg7[%c6, %c0_54, %c0_55] : memref<8x16x128xbf16, #tpu.memory_space<vmem>>, vector<1x16x128xbf16>
    %264 = vector.shape_cast %263 : vector<1x16x128xbf16> to vector<16x128xbf16>
    %265 = vector.shape_cast %262 : vector<16x128xbf16> to vector<1x16x128xbf16>
    tpu.vector_store %arg7[%c6, %c0_54, %c0_55], %265 {strides = array<i32>} : memref<8x16x128xbf16, #tpu.memory_space<vmem>>, vector<1x16x128xbf16>,
    %266 = vector.extract_strided_slice %10 {offsets = [7, 0, 0], sizes = [1, 16, 384], strides = [1, 1, 1]} : vector<8x16x384xf32> to vector<1x16x384xf32>
    %267 = vector.shape_cast %266 : vector<1x16x384xf32> to vector<16x384xf32>
    %268 = arith.truncf %261 : vector<16x128xf32> to vector<16x128xbf16>
    %cst_56 = arith.constant dense<0.000000e+00> : vector<16x384xf32>
    %269 = tpu.matmul %268, %11, %cst_56 {dimension_numbers = #tpu.dot_dimension_numbers<[1], [0], [0], [1], [0, 0, 1, 1], [], []>} : vector<16x128xbf16>, vector<128x384xbf16>, vector<16x384xf32> -> vector<16x384xf32>
    %270 = vector.extract_strided_slice %267 {offsets = [0, 0], sizes = [16, 128], strides = [1, 1]} : vector<16x384xf32> to vector<16x128xf32>
    %271 = vector.extract_strided_slice %269 {offsets = [0, 0], sizes = [16, 128], strides = [1, 1]} : vector<16x384xf32> to vector<16x128xf32>
    %272 = arith.addf %270, %271 : vector<16x128xf32>
    %273 = arith.negf %272 : vector<16x128xf32>
    %274 = math.exp %273 : vector<16x128xf32>
    %cst_57 = arith.constant 1.000000e+00 : f32
    %275 = vector.broadcast %cst_57 : f32 to vector<16x128xf32>
    %276 = arith.addf %275, %274 : vector<16x128xf32>
    %277 = arith.divf %275, %276 : vector<16x128xf32>
    %278 = vector.extract_strided_slice %267 {offsets = [0, 128], sizes = [16, 128], strides = [1, 1]} : vector<16x384xf32> to vector<16x128xf32>
    %279 = vector.extract_strided_slice %269 {offsets = [0, 128], sizes = [16, 128], strides = [1, 1]} : vector<16x384xf32> to vector<16x128xf32>
    %280 = arith.addf %278, %279 : vector<16x128xf32>
    %281 = arith.negf %280 : vector<16x128xf32>
    %282 = math.exp %281 : vector<16x128xf32>
    %cst_58 = arith.constant 1.000000e+00 : f32
    %283 = vector.broadcast %cst_58 : f32 to vector<16x128xf32>
    %284 = arith.addf %283, %282 : vector<16x128xf32>
    %285 = arith.divf %283, %284 : vector<16x128xf32>
    %286 = vector.extract_strided_slice %267 {offsets = [0, 256], sizes = [16, 128], strides = [1, 1]} : vector<16x384xf32> to vector<16x128xf32>
    %287 = vector.extract_strided_slice %269 {offsets = [0, 256], sizes = [16, 128], strides = [1, 1]} : vector<16x384xf32> to vector<16x128xf32>
    %288 = vector.broadcast %12 : vector<1x128xf32> to vector<16x128xf32>
    %289 = arith.addf %287, %288 : vector<16x128xf32>
    %290 = arith.mulf %277, %289 : vector<16x128xf32>
    %291 = arith.addf %286, %290 : vector<16x128xf32>
    %292 = math.tanh %291 : vector<16x128xf32>
    %cst_59 = arith.constant 1.000000e+00 : f32
    %293 = vector.broadcast %cst_59 : f32 to vector<16x128xf32>
    %294 = arith.subf %293, %285 : vector<16x128xf32>
    %295 = arith.mulf %294, %292 : vector<16x128xf32>
    %296 = arith.mulf %285, %261 : vector<16x128xf32>
    %297 = arith.addf %295, %296 : vector<16x128xf32>
    %298 = arith.truncf %297 : vector<16x128xf32> to vector<16x128xbf16>
    %c7 = arith.constant 7 : index
    %c0_60 = arith.constant 0 : index
    %c0_61 = arith.constant 0 : index
    %299 = vector.load %arg7[%c7, %c0_60, %c0_61] : memref<8x16x128xbf16, #tpu.memory_space<vmem>>, vector<1x16x128xbf16>
    %300 = vector.shape_cast %299 : vector<1x16x128xbf16> to vector<16x128xbf16>
    %301 = vector.shape_cast %298 : vector<16x128xbf16> to vector<1x16x128xbf16>
    tpu.vector_store %arg7[%c7, %c0_60, %c0_61], %301 {strides = array<i32>} : memref<8x16x128xbf16, #tpu.memory_space<vmem>>, vector<1x16x128xbf16>,
    %c0_62 = arith.constant 0 : index
    %c0_63 = arith.constant 0 : index
    %302 = vector.load %arg8[%c0_62, %c0_63] : memref<16x128xf32, #tpu.memory_space<vmem>>, vector<16x128xf32>
    tpu.vector_store %arg8[%c0_62, %c0_63], %297 {strides = array<i32>} : memref<16x128xf32, #tpu.memory_space<vmem>>, vector<16x128xf32>,
    return
  }
  func.func @transform_0(%arg0: i32, %arg1: i32) -> (i32, i32, i32) {
    %c0_i32 = arith.constant 0 : i32
    %c0_i32_0 = arith.constant 0 : i32
    return %arg1, %arg0, %c0_i32 : i32, i32, i32
  }
  func.func @transform_1(%arg0: i32, %arg1: i32) -> (i32, i32) {
    %c0_i32 = arith.constant 0 : i32
    %c0_i32_0 = arith.constant 0 : i32
    %c0_i32_1 = arith.constant 0 : i32
    return %c0_i32, %c0_i32_0 : i32, i32
  }
  func.func @transform_2(%arg0: i32, %arg1: i32) -> (i32, i32) {
    %c0_i32 = arith.constant 0 : i32
    %c0_i32_0 = arith.constant 0 : i32
    %c0_i32_1 = arith.constant 0 : i32
    return %c0_i32, %c0_i32_0 : i32, i32
  }
  func.func @transform_3(%arg0: i32, %arg1: i32) -> (i32, i32) {
    %c0_i32 = arith.constant 0 : i32
    %c0_i32_0 = arith.constant 0 : i32
    %c0_i32_1 = arith.constant 0 : i32
    return %c0_i32, %c0_i32_0 : i32, i32
  }
  func.func @transform_4(%arg0: i32, %arg1: i32) -> (i32, i32) {
    %c0_i32 = arith.constant 0 : i32
    %c0_i32_0 = arith.constant 0 : i32
    %c0_i32_1 = arith.constant 0 : i32
    return %c0_i32, %c0_i32_0 : i32, i32
  }
  func.func @transform_5(%arg0: i32, %arg1: i32) -> (i32, i32, i32) {
    %c0_i32 = arith.constant 0 : i32
    %c0_i32_0 = arith.constant 0 : i32
    return %arg1, %arg0, %c0_i32 : i32, i32, i32
  }
  func.func @transform_6(%arg0: i32, %arg1: i32) -> (i32, i32) {
    %c0_i32 = arith.constant 0 : i32
    %c0_i32_0 = arith.constant 0 : i32
    return %arg0, %c0_i32 : i32, i32
  }
}

</mosaic_0001>

<llo_original>
// kernel: tpu_custom_call.1
$region0: #{tpu_custom_call.1}
  #allocation0 [shape = 'u32[]', space=smem, size = 0x4, offset = 0x4, fixed_abs, tag = 'smem constant byte address 0x4 - core index']
  #allocation1 [shape = 'u32[72,128]{1,0:T(1,128)}', space=vmem, size = 0x9000, scoped, tag = 'internal scratch']
  %s0 = inlined_call_operand.hbm [shape: bf16[8,16,128], index: 0, kind: input, shape index: {}]
  %s1 = inlined_call_operand.hbm [shape: bf16[128,384], index: 1, kind: input, shape index: {}]
  %s2 = inlined_call_operand.hbm [shape: bf16[128,384], index: 2, kind: input, shape index: {}]
  %s3 = inlined_call_operand.hbm [shape: f32[1,384], index: 3, kind: input, shape index: {}]
  %s4 = inlined_call_operand.vmem [shape: f32[1,128], index: 4, kind: input, shape index: {}]
  %s5 = inlined_call_operand.hbm [shape: bf16[8,16,128], index: 5, kind: output, shape index: {0}]
  %s6 = inlined_call_operand.hbm [shape: f32[16,128], index: 6, kind: output, shape index: {1}]
  %7 = xla_tuple %s5, %s6
  %s8 = sld [smem:[#allocation0]]
  $region58: #{tpu_custom_call.1} parent=0
    _
  %s10 = ssub.s32 1, %s8
  %s11 = scalar_select 0, %s10, %s8
  $region1: #{tpu_custom_call.1} parent=0
    #allocation2 [shape = 'u8[32768]{0}', space=vmem, size = 0x8000, scoped, tag = 'input window, operand 0, single buffered']
    #allocation3 [shape = 's32[1]{0}', space=sflag, size = 0x4, scoped, tag = 'scoped memory for tpu_custom_call.1']
    #allocation4 [shape = 's32[1]{0}', space=sflag, size = 0x4, scoped, tag = 'scoped memory for tpu_custom_call.1']
    #allocation5 [shape = 'u8[98304]{0}', space=vmem, size = 0x18000, scoped, tag = 'input window, operand 1, single buffered']
    #allocation6 [shape = 's32[1]{0}', space=sflag, size = 0x4, scoped, tag = 'scoped memory for tpu_custom_call.1']
    #allocation7 [shape = 'u8[98304]{0}', space=vmem, size = 0x18000, scoped, tag = 'input window, operand 2, single buffered']
    #allocation8 [shape = 'u8[1536]{0}', space=vmem, size = 0x800, scoped, tag = 'input window, operand 3, single buffered']
    #allocation9 [shape = 's32[1]{0}', space=sflag, size = 0x4, scoped, tag = 'scoped memory for tpu_custom_call.1']
    #allocation10 [shape = 'u8[32768]{0}', space=vmem, size = 0x8000, scoped, tag = 'output window, operand 0, single buffered']
    #allocation11 [shape = 'u8[8192]{0}', space=vmem, size = 0x2000, scoped, tag = 'output window, operand 1, single buffered']
    #allocation12 [shape = 's32[1]{0}', space=sflag, size = 0x4, scoped, tag = 'scoped memory for tpu_custom_call.1']
    %12 = vsyncpa [#allocation3], 0
    %13 = vsyncpa [#allocation6], 0
    %14 = vsyncpa [#allocation9], 0
    %15 = vsyncpa [#allocation4], 0
    %16 = vsyncpa [#allocation12], 0
    // Predicated region
    $region2: #{tpu_custom_call.1} parent=1 // pred_check
      _
    $region3: #{tpu_custom_call.1} parent=1 // pred_check_branch
      %18 = sbr.rel (0) target = $region5
    $region4: #{tpu_custom_call.1} parent=1 // pred_region
      %20 = vsyncadd [#allocation3], 0
      %s21 = sshll.u32 %s0, 4
      %s22 = int_to_ptr.hbm [resolvable:$true] %s21
      %s23 = sshll.u32 [#allocation2], 4
      %s24 = int_to_ptr.vmem [resolvable:$true] %s23
      %29 = dma.hbm_to_vmem [thread:$0]  %s22, 1024, %s24, [#allocation3], 64, 64, 4
    $region5: #{tpu_custom_call.1} parent=1 // pred_fallthru
      _
    // Predicated region
    $region6: #{tpu_custom_call.1} parent=1 // pred_check
      _
    $region7: #{tpu_custom_call.1} parent=1 // pred_check_branch
      %31 = sbr.rel (0) target = $region9
    $region8: #{tpu_custom_call.1} parent=1 // pred_region
      %33 = vsyncadd [#allocation6], 0
      %s34 = sshll.u32 %s1, 4
      %s35 = int_to_ptr.hbm [resolvable:$true] %s34
      %s36 = sshll.u32 [#allocation5], 4
      %s37 = int_to_ptr.vmem [resolvable:$true] %s36
      %42 = dma.hbm_to_vmem [thread:$0]  %s35, 3072, %s37, [#allocation6], 192, 192, 12
    $region9: #{tpu_custom_call.1} parent=1 // pred_fallthru
      _
    // Predicated region
    $region10: #{tpu_custom_call.1} parent=1 // pred_check
      _
    $region11: #{tpu_custom_call.1} parent=1 // pred_check_branch
      %44 = sbr.rel (0) target = $region13
    $region12: #{tpu_custom_call.1} parent=1 // pred_region
      %46 = vsyncadd [#allocation6], 0
      %s47 = sshll.u32 %s2, 4
      %s48 = int_to_ptr.hbm [resolvable:$true] %s47
      %s49 = sshll.u32 [#allocation7], 4
      %s50 = int_to_ptr.vmem [resolvable:$true] %s49
      %55 = dma.hbm_to_vmem [thread:$0]  %s48, 3072, %s50, [#allocation6], 192, 192, 12
    $region13: #{tpu_custom_call.1} parent=1 // pred_fallthru
      _
    // Predicated region
    $region14: #{tpu_custom_call.1} parent=1 // pred_check
      _
    $region15: #{tpu_custom_call.1} parent=1 // pred_check_branch
      %57 = sbr.rel (0) target = $region17
    $region16: #{tpu_custom_call.1} parent=1 // pred_region
      %59 = vsyncadd [#allocation9], 0
      %s61 = sshll.u32 %s3, 4
      %s62 = int_to_ptr.hbm [resolvable:$true] %s61
      %s63 = sshll.u32 [#allocation8], 4
      %s64 = int_to_ptr.vmem [resolvable:$true] %s63
      %66 = dma.hbm_to_vmem [thread:$0]  %s62, 48, %s64, [#allocation9]
    $region17: #{tpu_custom_call.1} parent=1 // pred_fallthru
      _
    // Predicated region
    $region18: #{tpu_custom_call.1} parent=1 // pred_check
      _
    $region19: #{tpu_custom_call.1} parent=1 // pred_check_branch
      %68 = sbr.rel (0) target = $region21
    $region20: #{tpu_custom_call.1} parent=1 // pred_region
      _
    $region21: #{tpu_custom_call.1} parent=1 // pred_fallthru
      _
    // Predicated region
    $region22: #{tpu_custom_call.1} parent=1 // pred_check
      _
    $region23: #{tpu_custom_call.1} parent=1 // pred_check_branch
      %70 = sbr.rel (0) target = $region25
    $region24: #{tpu_custom_call.1} parent=1 // pred_region
      %72 = dma.done [#allocation3], 1024
    $region25: #{tpu_custom_call.1} parent=1 // pred_fallthru
      _
    // Predicated region
    $region26: #{tpu_custom_call.1} parent=1 // pred_check
      _
    $region27: #{tpu_custom_call.1} parent=1 // pred_check_branch
      %74 = sbr.rel (0) target = $region29
    $region28: #{tpu_custom_call.1} parent=1 // pred_region
      %76 = dma.done [#allocation6], 3072
    $region29: #{tpu_custom_call.1} parent=1 // pred_fallthru
      _
    // Predicated region
    $region30: #{tpu_custom_call.1} parent=1 // pred_check
      _
    $region31: #{tpu_custom_call.1} parent=1 // pred_check_branch
      %78 = sbr.rel (0) target = $region33
    $region32: #{tpu_custom_call.1} parent=1 // pred_region
      %80 = dma.done [#allocation6], 3072
    $region33: #{tpu_custom_call.1} parent=1 // pred_fallthru
      _
    // Predicated region
    $region34: #{tpu_custom_call.1} parent=1 // pred_check
      _
    $region35: #{tpu_custom_call.1} parent=1 // pred_check_branch
      %82 = sbr.rel (0) target = $region37
    $region36: #{tpu_custom_call.1} parent=1 // pred_region
      %84 = dma.done [#allocation9], 48
    $region37: #{tpu_custom_call.1} parent=1 // pred_fallthru
      _
    %p85 = scmp.eq.s32.totalorder 0, 0
    // Predicated region
    $region38: #{tpu_custom_call.1} parent=1 // pred_check
      %p86 = pneg %p85
    $region39: #{tpu_custom_call.1} parent=1 // pred_check_branch
      %88 = sbr.rel (%p86) target = $region41
    $region40: #{tpu_custom_call.1} parent=1 // pred_region
      %89 = vst [vmem:[#allocation11] sm:$0xff] 0.0
      %90 = vst [vmem:[#allocation11 + $0x8] sm:$0xff] 0.0
    $region41: #{tpu_custom_call.1} parent=1 // pred_fallthru
      _
    %v91 = vld [vmem:[#allocation2] sm:$0xf]
    %v92 = vld [vmem:[#allocation2 + $0x4] sm:$0xf]
    %v93 = vld [vmem:[#allocation2 + $0x8] sm:$0xf]
    %v94 = vld [vmem:[#allocation2 + $0xc] sm:$0xf]
    %v95 = vld [vmem:[#allocation2 + $0x10] sm:$0xf]
    %v96 = vld [vmem:[#allocation2 + $0x14] sm:$0xf]
    %v97 = vld [vmem:[#allocation2 + $0x18] sm:$0xf]
    %v98 = vld [vmem:[#allocation2 + $0x1c] sm:$0xf]
    %v99 = vld [vmem:[#allocation2 + $0x20] sm:$0xf]
    %v100 = vld [vmem:[#allocation2 + $0x24] sm:$0xf]
    %v101 = vld [vmem:[#allocation2 + $0x28] sm:$0xf]
    %v102 = vld [vmem:[#allocation2 + $0x2c] sm:$0xf]
    %v103 = vld [vmem:[#allocation2 + $0x30] sm:$0xf]
    %v104 = vld [vmem:[#allocation2 + $0x34] sm:$0xf]
    %v105 = vld [vmem:[#allocation2 + $0x38] sm:$0xf]
    %v106 = vld [vmem:[#allocation2 + $0x3c] sm:$0xf]
    %v107 = vld [vmem:[#allocation5] sm:$0xff]
    %v108 = vld [vmem:[#allocation5 + $0x8] sm:$0xf]
    %v109 = vld [vmem:[#allocation5 + $0xc] sm:$0xff]
    %v110 = vld [vmem:[#allocation5 + $0x14] sm:$0xf]
    %v111 = vld [vmem:[#allocation5 + $0x18] sm:$0xff]
    %v112 = vld [vmem:[#allocation5 + $0x20] sm:$0xf]
    %v113 = vld [vmem:[#allocation5 + $0x24] sm:$0xff]
    %v114 = vld [vmem:[#allocation5 + $0x2c] sm:$0xf]
    %v115 = vld [vmem:[#allocation5 + $0x30] sm:$0xff]
    %v116 = vld [vmem:[#allocation5 + $0x38] sm:$0xf]
    %v117 = vld [vmem:[#allocation5 + $0x3c] sm:$0xff]
    %v118 = vld [vmem:[#allocation5 + $0x44] sm:$0xf]
    %v119 = vld [vmem:[#allocation5 + $0x48] sm:$0xff]
    %v120 = vld [vmem:[#allocation5 + $0x50] sm:$0xf]
    %v121 = vld [vmem:[#allocation5 + $0x54] sm:$0xff]
    %v122 = vld [vmem:[#allocation5 + $0x5c] sm:$0xf]
    %v123 = vld [vmem:[#allocation5 + $0x60] sm:$0xff]
    %v124 = vld [vmem:[#allocation5 + $0x68] sm:$0xf]
    %v125 = vld [vmem:[#allocation5 + $0x6c] sm:$0xff]
    %v126 = vld [vmem:[#allocation5 + $0x74] sm:$0xf]
    %v127 = vld [vmem:[#allocation5 + $0x78] sm:$0xff]
    %v128 = vld [vmem:[#allocation5 + $0x80] sm:$0xf]
    %v129 = vld [vmem:[#allocation5 + $0x84] sm:$0xff]
    %v130 = vld [vmem:[#allocation5 + $0x8c] sm:$0xf]
    %v131 = vld [vmem:[#allocation5 + $0x90] sm:$0xff]
    %v132 = vld [vmem:[#allocation5 + $0x98] sm:$0xf]
    %v133 = vld [vmem:[#allocation5 + $0x9c] sm:$0xff]
    %v134 = vld [vmem:[#allocation5 + $0xa4] sm:$0xf]
    %v135 = vld [vmem:[#allocation5 + $0xa8] sm:$0xff]
    %v136 = vld [vmem:[#allocation5 + $0xb0] sm:$0xf]
    %v137 = vld [vmem:[#allocation5 + $0xb4] sm:$0xff]
    %v138 = vld [vmem:[#allocation5 + $0xbc] sm:$0xf]
    %v139 = vld [vmem:[#allocation8] sm:$0x7]
    %v141 = vperm.slane %v139, 0
    %v142 = vperm.slane %v139, 1
    %v143 = vperm.slane %v139, 2
    %v163 = vunpack.c.l.b16 %v91
    %v164 = vunpack.c.l.b16 %v92
    %v165 = vunpack.c.l.b16 %v93
    %v166 = vunpack.c.l.b16 %v94
    %v167 = vunpack.c.l.b16 %v95
    %v168 = vunpack.c.l.b16 %v96
    %v169 = vunpack.c.l.b16 %v97
    %v170 = vunpack.c.l.b16 %v98
    %v171 = vunpack.c.l.b16 %v99
    %v172 = vunpack.c.l.b16 %v100
    %v173 = vunpack.c.l.b16 %v101
    %v174 = vunpack.c.l.b16 %v102
    %v175 = vunpack.c.l.b16 %v103
    %v176 = vunpack.c.l.b16 %v104
    %v177 = vunpack.c.l.b16 %v105
    %v178 = vunpack.c.l.b16 %v106
    %v179 = vpack.c.b16 %v164, %v163
    %v180 = vpack.c.b16 %v166, %v165
    %v181 = vpack.c.b16 %v168, %v167
    %v182 = vpack.c.b16 %v170, %v169
    %v183 = vpack.c.b16 %v172, %v171
    %v184 = vpack.c.b16 %v174, %v173
    %v185 = vpack.c.b16 %v176, %v175
    %v186 = vpack.c.b16 %v178, %v177
    %v227 = vunpack.c.l.b16 %v107
    %v228 = vunpack.c.h.b16 %v107
    %v229 = vunpack.c.l.b16 %v108
    %v230 = vunpack.c.l.b16 %v109
    %v231 = vunpack.c.h.b16 %v109
    %v232 = vunpack.c.l.b16 %v110
    %v233 = vunpack.c.l.b16 %v111
    %v234 = vunpack.c.h.b16 %v111
    %v235 = vunpack.c.l.b16 %v112
    %v236 = vunpack.c.l.b16 %v113
    %v237 = vunpack.c.h.b16 %v113
    %v238 = vunpack.c.l.b16 %v114
    %v239 = vunpack.c.l.b16 %v115
    %v240 = vunpack.c.h.b16 %v115
    %v241 = vunpack.c.l.b16 %v116
    %v242 = vunpack.c.l.b16 %v117
    %v243 = vunpack.c.h.b16 %v117
    %v244 = vunpack.c.l.b16 %v118
    %v245 = vunpack.c.l.b16 %v119
    %v246 = vunpack.c.h.b16 %v119
    %v247 = vunpack.c.l.b16 %v120
    %v248 = vunpack.c.l.b16 %v121
    %v249 = vunpack.c.h.b16 %v121
    %v250 = vunpack.c.l.b16 %v122
    %v251 = vunpack.c.l.b16 %v123
    %v252 = vunpack.c.h.b16 %v123
    %v253 = vunpack.c.l.b16 %v124
    %v254 = vunpack.c.l.b16 %v125
    %v255 = vunpack.c.h.b16 %v125
    %v256 = vunpack.c.l.b16 %v126
    %v257 = vunpack.c.l.b16 %v127
    %v258 = vunpack.c.h.b16 %v127
    %v259 = vunpack.c.l.b16 %v128
    %v260 = vunpack.c.l.b16 %v129
    %v261 = vunpack.c.h.b16 %v129
    %v262 = vunpack.c.l.b16 %v130
    %v263 = vunpack.c.l.b16 %v131
    %v264 = vunpack.c.h.b16 %v131
    %v265 = vunpack.c.l.b16 %v132
    %v266 = vunpack.c.l.b16 %v133
    %v267 = vunpack.c.h.b16 %v133
    %v268 = vunpack.c.l.b16 %v134
    %v269 = vunpack.c.l.b16 %v135
    %v270 = vunpack.c.h.b16 %v135
    %v271 = vunpack.c.l.b16 %v136
    %v272 = vunpack.c.l.b16 %v137
    %v273 = vunpack.c.h.b16 %v137
    %v274 = vunpack.c.l.b16 %v138
    %v275 = vpack.c.b16 %v230, %v227
    %v276 = vpack.c.b16 %v231, %v228
    %v277 = vpack.c.b16 %v232, %v229
    %v278 = vpack.c.b16 %v236, %v233
    %v279 = vpack.c.b16 %v237, %v234
    %v280 = vpack.c.b16 %v238, %v235
    %v281 = vpack.c.b16 %v242, %v239
    %v282 = vpack.c.b16 %v243, %v240
    %v283 = vpack.c.b16 %v244, %v241
    %v284 = vpack.c.b16 %v248, %v245
    %v285 = vpack.c.b16 %v249, %v246
    %v286 = vpack.c.b16 %v250, %v247
    %v287 = vpack.c.b16 %v254, %v251
    %v288 = vpack.c.b16 %v255, %v252
    %v289 = vpack.c.b16 %v256, %v253
    %v290 = vpack.c.b16 %v260, %v257
    %v291 = vpack.c.b16 %v261, %v258
    %v292 = vpack.c.b16 %v262, %v259
    %v293 = vpack.c.b16 %v266, %v263
    %v294 = vpack.c.b16 %v267, %v264
    %v295 = vpack.c.b16 %v268, %v265
    %v296 = vpack.c.b16 %v272, %v269
    %v297 = vpack.c.b16 %v273, %v270
    %v298 = vpack.c.b16 %v274, %v271
    %323 = vmatpush.bf16.msra.mxu0 %v296
    %324 = vmatpush.bf16.msra.mxu0 %v293
    %325 = vmatpush.bf16.msra.mxu0 %v290
    %326 = vmatpush.bf16.msra.mxu0 %v287
    %327 = vmatpush.bf16.msra.mxu0 %v284
    %328 = vmatpush.bf16.msra.mxu0 %v281
    %329 = vmatpush.bf16.msra.mxu0 %v278
    %330 = vmatpush.bf16.msra.mxu0 %v275
    %331 = vmatmul.bf16.gmra.mxu0 %v179
    %v332 = vpop.f32.mrf.mxu0
    %v333 = vadd.f32 %v141, %v332
    %v334 = vpop.f32.mrf.mxu0
    %v335 = vadd.f32 %v141, %v334
    %336 = vmatmul.bf16.gmra.mxu0 %v180
    %v337 = vpop.f32.mrf.mxu0
    %v338 = vadd.f32 %v141, %v337
    %v339 = vpop.f32.mrf.mxu0
    %v340 = vadd.f32 %v141, %v339
    %341 = vmatmul.bf16.gmra.mxu0 %v181
    %v342 = vpop.f32.mrf.mxu0
    %v343 = vadd.f32 %v141, %v342
    %v344 = vpop.f32.mrf.mxu0
    %v345 = vadd.f32 %v141, %v344
    %346 = vmatmul.bf16.gmra.mxu0 %v182
    %v347 = vpop.f32.mrf.mxu0
    %v348 = vadd.f32 %v141, %v347
    %v349 = vpop.f32.mrf.mxu0
    %v350 = vadd.f32 %v141, %v349
    %351 = vmatmul.bf16.gmra.mxu0 %v183
    %v352 = vpop.f32.mrf.mxu0
    %v353 = vadd.f32 %v141, %v352
    %v354 = vpop.f32.mrf.mxu0
    %v355 = vadd.f32 %v141, %v354
    %356 = vmatmul.bf16.gmra.mxu0 %v184
    %v357 = vpop.f32.mrf.mxu0
    %v358 = vadd.f32 %v141, %v357
    %v359 = vpop.f32.mrf.mxu0
    %v360 = vadd.f32 %v141, %v359
    %361 = vmatmul.bf16.gmra.mxu0 %v185
    %v362 = vpop.f32.mrf.mxu0
    %v363 = vadd.f32 %v141, %v362
    %v364 = vpop.f32.mrf.mxu0
    %v365 = vadd.f32 %v141, %v364
    %366 = vmatmul.bf16.gmra.mxu0 %v186
    %v367 = vpop.f32.mrf.mxu0
    %v368 = vadd.f32 %v141, %v367
    %v369 = vpop.f32.mrf.mxu0
    %v370 = vadd.f32 %v141, %v369
    %371 = vdwg.mxu0
    %372 = vmatpush.bf16.msra.mxu0 %v297
    %373 = vmatpush.bf16.msra.mxu0 %v294
    %374 = vmatpush.bf16.msra.mxu0 %v291
    %375 = vmatpush.bf16.msra.mxu0 %v288
    %376 = vmatpush.bf16.msra.mxu0 %v285
    %377 = vmatpush.bf16.msra.mxu0 %v282
    %378 = vmatpush.bf16.msra.mxu0 %v279
    %379 = vmatpush.bf16.msra.mxu0 %v276
    %380 = vmatmul.bf16.gmra.mxu0 %v179
    %v381 = vpop.f32.mrf.mxu0
    %v382 = vadd.f32 %v142, %v381
    %v383 = vpop.f32.mrf.mxu0
    %v384 = vadd.f32 %v142, %v383
    %385 = vmatmul.bf16.gmra.mxu0 %v180
    %v386 = vpop.f32.mrf.mxu0
    %v387 = vadd.f32 %v142, %v386
    %v388 = vpop.f32.mrf.mxu0
    %v389 = vadd.f32 %v142, %v388
    %390 = vmatmul.bf16.gmra.mxu0 %v181
    %v391 = vpop.f32.mrf.mxu0
    %v392 = vadd.f32 %v142, %v391
    %v393 = vpop.f32.mrf.mxu0
    %v394 = vadd.f32 %v142, %v393
    %395 = vmatmul.bf16.gmra.mxu0 %v182
    %v396 = vpop.f32.mrf.mxu0
    %v397 = vadd.f32 %v142, %v396
    %v398 = vpop.f32.mrf.mxu0
    %v399 = vadd.f32 %v142, %v398
    %400 = vmatmul.bf16.gmra.mxu0 %v183
    %v401 = vpop.f32.mrf.mxu0
    %v402 = vadd.f32 %v142, %v401
    %v403 = vpop.f32.mrf.mxu0
    %v404 = vadd.f32 %v142, %v403
    %405 = vmatmul.bf16.gmra.mxu0 %v184
    %v406 = vpop.f32.mrf.mxu0
    %v407 = vadd.f32 %v142, %v406
    %v408 = vpop.f32.mrf.mxu0
    %v409 = vadd.f32 %v142, %v408
    %410 = vmatmul.bf16.gmra.mxu0 %v185
    %v411 = vpop.f32.mrf.mxu0
    %v412 = vadd.f32 %v142, %v411
    %v413 = vpop.f32.mrf.mxu0
    %v414 = vadd.f32 %v142, %v413
    %415 = vmatmul.bf16.gmra.mxu0 %v186
    %v416 = vpop.f32.mrf.mxu0
    %v417 = vadd.f32 %v142, %v416
    %v418 = vpop.f32.mrf.mxu0
    %v419 = vadd.f32 %v142, %v418
    %420 = vdwg.mxu0
    %421 = vmatpush.bf16.msra.mxu0 %v298
    %422 = vmatpush.bf16.msra.mxu0 %v295
    %423 = vmatpush.bf16.msra.mxu0 %v292
    %424 = vmatpush.bf16.msra.mxu0 %v289
    %425 = vmatpush.bf16.msra.mxu0 %v286
    %426 = vmatpush.bf16.msra.mxu0 %v283
    %427 = vmatpush.bf16.msra.mxu0 %v280
    %428 = vmatpush.bf16.msra.mxu0 %v277
    %429 = vmatmul.bf16.gmra.mxu0 %v179
    %v430 = vpop.f32.mrf.mxu0
    %v431 = vadd.f32 %v143, %v430
    %v432 = vpop.f32.mrf.mxu0
    %v433 = vadd.f32 %v143, %v432
    %434 = vmatmul.bf16.gmra.mxu0 %v180
    %v435 = vpop.f32.mrf.mxu0
    %v436 = vadd.f32 %v143, %v435
    %v437 = vpop.f32.mrf.mxu0
    %v438 = vadd.f32 %v143, %v437
    %439 = vmatmul.bf16.gmra.mxu0 %v181
    %v440 = vpop.f32.mrf.mxu0
    %v441 = vadd.f32 %v143, %v440
    %v442 = vpop.f32.mrf.mxu0
    %v443 = vadd.f32 %v143, %v442
    %444 = vmatmul.bf16.gmra.mxu0 %v182
    %v445 = vpop.f32.mrf.mxu0
    %v446 = vadd.f32 %v143, %v445
    %v447 = vpop.f32.mrf.mxu0
    %v448 = vadd.f32 %v143, %v447
    %449 = vmatmul.bf16.gmra.mxu0 %v183
    %v450 = vpop.f32.mrf.mxu0
    %v451 = vadd.f32 %v143, %v450
    %v452 = vpop.f32.mrf.mxu0
    %v453 = vadd.f32 %v143, %v452
    %454 = vmatmul.bf16.gmra.mxu0 %v184
    %v455 = vpop.f32.mrf.mxu0
    %v456 = vadd.f32 %v143, %v455
    %v457 = vpop.f32.mrf.mxu0
    %v458 = vadd.f32 %v143, %v457
    %459 = vmatmul.bf16.gmra.mxu0 %v185
    %v460 = vpop.f32.mrf.mxu0
    %v461 = vadd.f32 %v143, %v460
    %v462 = vpop.f32.mrf.mxu0
    %v463 = vadd.f32 %v143, %v462
    %464 = vmatmul.bf16.gmra.mxu0 %v186
    %v465 = vpop.f32.mrf.mxu0
    %v466 = vadd.f32 %v143, %v465
    %v467 = vpop.f32.mrf.mxu0
    %v468 = vadd.f32 %v143, %v467
    %469 = vdwg.mxu0
    %v470 = vld [vmem:[#allocation7] sm:$0xff]
    %v471 = vld [vmem:[#allocation7 + $0x8] sm:$0xf]
    %v472 = vld [vmem:[#allocation7 + $0xc] sm:$0xff]
    %v473 = vld [vmem:[#allocation7 + $0x14] sm:$0xf]
    %v474 = vld [vmem:[#allocation7 + $0x18] sm:$0xff]
    %v475 = vld [vmem:[#allocation7 + $0x20] sm:$0xf]
    %v476 = vld [vmem:[#allocation7 + $0x24] sm:$0xff]
    %v477 = vld [vmem:[#allocation7 + $0x2c] sm:$0xf]
    %v478 = vld [vmem:[#allocation7 + $0x30] sm:$0xff]
    %v479 = vld [vmem:[#allocation7 + $0x38] sm:$0xf]
    %v480 = vld [vmem:[#allocation7 + $0x3c] sm:$0xff]
    %v481 = vld [vmem:[#allocation7 + $0x44] sm:$0xf]
    %v482 = vld [vmem:[#allocation7 + $0x48] sm:$0xff]
    %v483 = vld [vmem:[#allocation7 + $0x50] sm:$0xf]
    %v484 = vld [vmem:[#allocation7 + $0x54] sm:$0xff]
    %v485 = vld [vmem:[#allocation7 + $0x5c] sm:$0xf]
    %v486 = vld [vmem:[#allocation7 + $0x60] sm:$0xff]
    %v487 = vld [vmem:[#allocation7 + $0x68] sm:$0xf]
    %v488 = vld [vmem:[#allocation7 + $0x6c] sm:$0xff]
    %v489 = vld [vmem:[#allocation7 + $0x74] sm:$0xf]
    %v490 = vld [vmem:[#allocation7 + $0x78] sm:$0xff]
    %v491 = vld [vmem:[#allocation7 + $0x80] sm:$0xf]
    %v492 = vld [vmem:[#allocation7 + $0x84] sm:$0xff]
    %v493 = vld [vmem:[#allocation7 + $0x8c] sm:$0xf]
    %v494 = vld [vmem:[#allocation7 + $0x90] sm:$0xff]
    %v495 = vld [vmem:[#allocation7 + $0x98] sm:$0xf]
    %v496 = vld [vmem:[#allocation7 + $0x9c] sm:$0xff]
    %v497 = vld [vmem:[#allocation7 + $0xa4] sm:$0xf]
    %v498 = vld [vmem:[#allocation7 + $0xa8] sm:$0xff]
    %v499 = vld [vmem:[#allocation7 + $0xb0] sm:$0xf]
    %v500 = vld [vmem:[#allocation7 + $0xb4] sm:$0xff]
    %v501 = vld [vmem:[#allocation7 + $0xbc] sm:$0xf]
    %v502 = vld [vmem:[%s4] sm:$0x1]
    %v503 = vld [vmem:[#allocation11] sm:$0xff]
    %v504 = vld [vmem:[#allocation11 + $0x8] sm:$0xff]
    %v505 = vpack.c.bf16 %v504, %v503
    %v538 = vunpack.c.l.b16 %v470
    %v539 = vunpack.c.h.b16 %v470
    %v540 = vunpack.c.l.b16 %v471
    %v541 = vunpack.c.l.b16 %v472
    %v542 = vunpack.c.h.b16 %v472
    %v543 = vunpack.c.l.b16 %v473
    %v544 = vunpack.c.l.b16 %v474
    %v545 = vunpack.c.h.b16 %v474
    %v546 = vunpack.c.l.b16 %v475
    %v547 = vunpack.c.l.b16 %v476
    %v548 = vunpack.c.h.b16 %v476
    %v549 = vunpack.c.l.b16 %v477
    %v550 = vunpack.c.l.b16 %v478
    %v551 = vunpack.c.h.b16 %v478
    %v552 = vunpack.c.l.b16 %v479
    %v553 = vunpack.c.l.b16 %v480
    %v554 = vunpack.c.h.b16 %v480
    %v555 = vunpack.c.l.b16 %v481
    %v556 = vunpack.c.l.b16 %v482
    %v557 = vunpack.c.h.b16 %v482
    %v558 = vunpack.c.l.b16 %v483
    %v559 = vunpack.c.l.b16 %v484
    %v560 = vunpack.c.h.b16 %v484
    %v561 = vunpack.c.l.b16 %v485
    %v562 = vunpack.c.l.b16 %v486
    %v563 = vunpack.c.h.b16 %v486
    %v564 = vunpack.c.l.b16 %v487
    %v565 = vunpack.c.l.b16 %v488
    %v566 = vunpack.c.h.b16 %v488
    %v567 = vunpack.c.l.b16 %v489
    %v568 = vunpack.c.l.b16 %v490
    %v569 = vunpack.c.h.b16 %v490
    %v570 = vunpack.c.l.b16 %v491
    %v571 = vunpack.c.l.b16 %v492
    %v572 = vunpack.c.h.b16 %v492
    %v573 = vunpack.c.l.b16 %v493
    %v574 = vunpack.c.l.b16 %v494
    %v575 = vunpack.c.h.b16 %v494
    %v576 = vunpack.c.l.b16 %v495
    %v577 = vunpack.c.l.b16 %v496
    %v578 = vunpack.c.h.b16 %v496
    %v579 = vunpack.c.l.b16 %v497
    %v580 = vunpack.c.l.b16 %v498
    %v581 = vunpack.c.h.b16 %v498
    %v582 = vunpack.c.l.b16 %v499
    %v583 = vunpack.c.l.b16 %v500
    %v584 = vunpack.c.h.b16 %v500
    %v585 = vunpack.c.l.b16 %v501
    %v586 = vpack.c.b16 %v541, %v538
    %v587 = vpack.c.b16 %v542, %v539
    %v588 = vpack.c.b16 %v543, %v540
    %v589 = vpack.c.b16 %v547, %v544
    %v590 = vpack.c.b16 %v548, %v545
    %v591 = vpack.c.b16 %v549, %v546
    %v592 = vpack.c.b16 %v553, %v550
    %v593 = vpack.c.b16 %v554, %v551
    %v594 = vpack.c.b16 %v555, %v552
    %v595 = vpack.c.b16 %v559, %v556
    %v596 = vpack.c.b16 %v560, %v557
    %v597 = vpack.c.b16 %v561, %v558
    %v598 = vpack.c.b16 %v565, %v562
    %v599 = vpack.c.b16 %v566, %v563
    %v600 = vpack.c.b16 %v567, %v564
    %v601 = vpack.c.b16 %v571, %v568
    %v602 = vpack.c.b16 %v572, %v569
    %v603 = vpack.c.b16 %v573, %v570
    %v604 = vpack.c.b16 %v577, %v574
    %v605 = vpack.c.b16 %v578, %v575
    %v606 = vpack.c.b16 %v579, %v576
    %v607 = vpack.c.b16 %v583, %v580
    %v608 = vpack.c.b16 %v584, %v581
    %v609 = vpack.c.b16 %v585, %v582
    %634 = vmatpush.bf16.msra.mxu0 %v607
    %635 = vmatpush.bf16.msra.mxu0 %v604
    %636 = vmatpush.bf16.msra.mxu0 %v601
    %637 = vmatpush.bf16.msra.mxu0 %v598
    %638 = vmatpush.bf16.msra.mxu0 %v595
    %639 = vmatpush.bf16.msra.mxu0 %v592
    %640 = vmatpush.bf16.msra.mxu0 %v589
    %641 = vmatpush.bf16.msra.mxu0 %v586
    %642 = vmatmul.bf16.gmra.mxu0 %v505
    %v643 = vpop.f32.mrf.mxu0
    %v644 = vadd.f32 0.0, %v643
    %v645 = vpop.f32.mrf.mxu0
    %v646 = vadd.f32 0.0, %v645
    %647 = vdwg.mxu0
    %648 = vmatpush.bf16.msra.mxu0 %v608
    %649 = vmatpush.bf16.msra.mxu0 %v605
    %650 = vmatpush.bf16.msra.mxu0 %v602
    %651 = vmatpush.bf16.msra.mxu0 %v599
    %652 = vmatpush.bf16.msra.mxu0 %v596
    %653 = vmatpush.bf16.msra.mxu0 %v593
    %654 = vmatpush.bf16.msra.mxu0 %v590
    %655 = vmatpush.bf16.msra.mxu0 %v587
    %656 = vmatmul.bf16.gmra.mxu0 %v505
    %v657 = vpop.f32.mrf.mxu0
    %v658 = vadd.f32 0.0, %v657
    %v659 = vpop.f32.mrf.mxu0
    %v660 = vadd.f32 0.0, %v659
    %661 = vdwg.mxu0
    %662 = vmatpush.bf16.msra.mxu0 %v609
    %663 = vmatpush.bf16.msra.mxu0 %v606
    %664 = vmatpush.bf16.msra.mxu0 %v603
    %665 = vmatpush.bf16.msra.mxu0 %v600
    %666 = vmatpush.bf16.msra.mxu0 %v597
    %667 = vmatpush.bf16.msra.mxu0 %v594
    %668 = vmatpush.bf16.msra.mxu0 %v591
    %669 = vmatpush.bf16.msra.mxu0 %v588
    %670 = vmatmul.bf16.gmra.mxu0 %v505
    %v671 = vpop.f32.mrf.mxu0
    %v672 = vadd.f32 0.0, %v671
    %v673 = vpop.f32.mrf.mxu0
    %v674 = vadd.f32 0.0, %v673
    %675 = vdwg.mxu0
    %v676 = vadd.f32 %v333, %v644
    %v677 = vadd.f32 %v335, %v646
    %v678 = vxor.u32 %v676, 2147483648
    %v679 = vxor.u32 %v677, 2147483648
    %v680 = vmul.f32 %v678, 1.442695
    %v681 = vpow.pop %v680
    %v682 = vmul.f32 %v679, 1.442695
    %v683 = vpow.pop %v682
    %v684 = vadd.f32 %v681, 1.0
    %v685 = vadd.f32 %v683, 1.0
    %v686 = vrcp.pop %v684
    %v687 = vmul.f32 %v684, %v686
    %v688 = vsub.f32 1.0, %v687
    %v689 = vmul.f32 %v686, %v688
    %v690 = vadd.f32 %v686, %v689
    %vm691 = vweird.f32 %v684
    %vm692 = vweird.f32 %v686
    %vm693 = vmor %vm691, %vm692
    %v694 = vsel %vm693, %v686, %v690
    %v695 = vand.u32 2147483647, %v684
    %vm696 = vcmp.eq.f32.partialorder %v695, 8.507059e+37
    %v697 = vand.u32 %v684, 2147483648
    %v698 = vor.u32 1.1754944e-38, %v697
    %v699 = vsel %vm696, %v698, %v694
    %v700 = vmul.f32 1.0, %v699
    %v701 = vrcp.pop %v685
    %v702 = vmul.f32 %v685, %v701
    %v703 = vsub.f32 1.0, %v702
    %v704 = vmul.f32 %v701, %v703
    %v705 = vadd.f32 %v701, %v704
    %vm706 = vweird.f32 %v685
    %vm707 = vweird.f32 %v701
    %vm708 = vmor %vm706, %vm707
    %v709 = vsel %vm708, %v701, %v705
    %v710 = vand.u32 2147483647, %v685
    %vm711 = vcmp.eq.f32.partialorder %v710, 8.507059e+37
    %v712 = vand.u32 %v685, 2147483648
    %v713 = vor.u32 1.1754944e-38, %v712
    %v714 = vsel %vm711, %v713, %v709
    %v715 = vmul.f32 1.0, %v714
    %v716 = vadd.f32 %v382, %v658
    %v717 = vadd.f32 %v384, %v660
    %v718 = vxor.u32 %v716, 2147483648
    %v719 = vxor.u32 %v717, 2147483648
    %v720 = vmul.f32 %v718, 1.442695
    %v721 = vpow.pop %v720
    %v722 = vmul.f32 %v719, 1.442695
    %v723 = vpow.pop %v722
    %v724 = vadd.f32 %v721, 1.0
    %v725 = vadd.f32 %v723, 1.0
    %v726 = vrcp.pop %v724
    %v727 = vmul.f32 %v724, %v726
    %v728 = vsub.f32 1.0, %v727
    %v729 = vmul.f32 %v726, %v728
    %v730 = vadd.f32 %v726, %v729
    %vm731 = vweird.f32 %v724
    %vm732 = vweird.f32 %v726
    %vm733 = vmor %vm731, %vm732
    %v734 = vsel %vm733, %v726, %v730
    %v735 = vand.u32 2147483647, %v724
    %vm736 = vcmp.eq.f32.partialorder %v735, 8.507059e+37
    %v737 = vand.u32 %v724, 2147483648
    %v738 = vor.u32 1.1754944e-38, %v737
    %v739 = vsel %vm736, %v738, %v734
    %v740 = vmul.f32 1.0, %v739
    %v741 = vrcp.pop %v725
    %v742 = vmul.f32 %v725, %v741
    %v743 = vsub.f32 1.0, %v742
    %v744 = vmul.f32 %v741, %v743
    %v745 = vadd.f32 %v741, %v744
    %vm746 = vweird.f32 %v725
    %vm747 = vweird.f32 %v741
    %vm748 = vmor %vm746, %vm747
    %v749 = vsel %vm748, %v741, %v745
    %v750 = vand.u32 2147483647, %v725
    %vm751 = vcmp.eq.f32.partialorder %v750, 8.507059e+37
    %v752 = vand.u32 %v725, 2147483648
    %v753 = vor.u32 1.1754944e-38, %v752
    %v754 = vsel %vm751, %v753, %v749
    %v755 = vmul.f32 1.0, %v754
    %v757 = vperm.slane %v502, 0
    %v759 = vadd.f32 %v672, %v757
    %v760 = vadd.f32 %v674, %v757
    %v761 = vmul.f32 %v700, %v759
    %v762 = vmul.f32 %v715, %v760
    %v763 = vadd.f32 %v431, %v761
    %v764 = vadd.f32 %v433, %v762
    %v765 = vtanh.pop %v763
    %v766 = vtanh.pop %v764
    %v767 = vsub.f32 1.0, %v740
    %v768 = vsub.f32 1.0, %v755
    %v769 = vmul.f32 %v767, %v765
    %v770 = vmul.f32 %v768, %v766
    %v771 = vmul.f32 %v740, %v503
    %v772 = vmul.f32 %v755, %v504
    %v773 = vadd.f32 %v769, %v771
    %v774 = vadd.f32 %v770, %v772
    %v775 = vpack.c.bf16 %v773, %v773
    %v776 = vpack.c.bf16 %v774, %v774
    %777 = vst [vmem:[#allocation10] sm:$0xf] %v775
    %778 = vst [vmem:[#allocation10 + $0x4] sm:$0xf] %v776
    %v781 = vunpack.c.l.b16 %v775
    %v782 = vunpack.c.l.b16 %v776
    %v783 = vpack.c.b16 %v782, %v781
    %785 = vmatpush.bf16.msra.mxu0 %v607
    %786 = vmatpush.bf16.msra.mxu0 %v604
    %787 = vmatpush.bf16.msra.mxu0 %v601
    %788 = vmatpush.bf16.msra.mxu0 %v598
    %789 = vmatpush.bf16.msra.mxu0 %v595
    %790 = vmatpush.bf16.msra.mxu0 %v592
    %791 = vmatpush.bf16.msra.mxu0 %v589
    %792 = vmatpush.bf16.msra.mxu0 %v586
    %793 = vmatmul.bf16.gmra.mxu0 %v783
    %v794 = vpop.f32.mrf.mxu0
    %v795 = vadd.f32 0.0, %v794
    %v796 = vpop.f32.mrf.mxu0
    %v797 = vadd.f32 0.0, %v796
    %798 = vdwg.mxu0
    %799 = vmatpush.bf16.msra.mxu0 %v608
    %800 = vmatpush.bf16.msra.mxu0 %v605
    %801 = vmatpush.bf16.msra.mxu0 %v602
    %802 = vmatpush.bf16.msra.mxu0 %v599
    %803 = vmatpush.bf16.msra.mxu0 %v596
    %804 = vmatpush.bf16.msra.mxu0 %v593
    %805 = vmatpush.bf16.msra.mxu0 %v590
    %806 = vmatpush.bf16.msra.mxu0 %v587
    %807 = vmatmul.bf16.gmra.mxu0 %v783
    %v808 = vpop.f32.mrf.mxu0
    %v809 = vadd.f32 0.0, %v808
    %v810 = vpop.f32.mrf.mxu0
    %v811 = vadd.f32 0.0, %v810
    %812 = vdwg.mxu0
    %813 = vmatpush.bf16.msra.mxu0 %v609
    %814 = vmatpush.bf16.msra.mxu0 %v606
    %815 = vmatpush.bf16.msra.mxu0 %v603
    %816 = vmatpush.bf16.msra.mxu0 %v600
    %817 = vmatpush.bf16.msra.mxu0 %v597
    %818 = vmatpush.bf16.msra.mxu0 %v594
    %819 = vmatpush.bf16.msra.mxu0 %v591
    %820 = vmatpush.bf16.msra.mxu0 %v588
    %821 = vmatmul.bf16.gmra.mxu0 %v783
    %v822 = vpop.f32.mrf.mxu0
    %v823 = vadd.f32 0.0, %v822
    %v824 = vpop.f32.mrf.mxu0
    %v825 = vadd.f32 0.0, %v824
    %826 = vdwg.mxu0
    %v827 = vadd.f32 %v338, %v795
    %v828 = vadd.f32 %v340, %v797
    %v829 = vxor.u32 %v827, 2147483648
    %v830 = vxor.u32 %v828, 2147483648
    %v831 = vmul.f32 %v829, 1.442695
    %v832 = vpow.pop %v831
    %v833 = vmul.f32 %v830, 1.442695
    %v834 = vpow.pop %v833
    %v835 = vadd.f32 %v832, 1.0
    %v836 = vadd.f32 %v834, 1.0
    %v837 = vrcp.pop %v835
    %v838 = vmul.f32 %v835, %v837
    %v839 = vsub.f32 1.0, %v838
    %v840 = vmul.f32 %v837, %v839
    %v841 = vadd.f32 %v837, %v840
    %vm842 = vweird.f32 %v835
    %vm843 = vweird.f32 %v837
    %vm844 = vmor %vm842, %vm843
    %v845 = vsel %vm844, %v837, %v841
    %v846 = vand.u32 2147483647, %v835
    %vm847 = vcmp.eq.f32.partialorder %v846, 8.507059e+37
    %v848 = vand.u32 %v835, 2147483648
    %v849 = vor.u32 1.1754944e-38, %v848
    %v850 = vsel %vm847, %v849, %v845
    %v851 = vmul.f32 1.0, %v850
    %v852 = vrcp.pop %v836
    %v853 = vmul.f32 %v836, %v852
    %v854 = vsub.f32 1.0, %v853
    %v855 = vmul.f32 %v852, %v854
    %v856 = vadd.f32 %v852, %v855
    %vm857 = vweird.f32 %v836
    %vm858 = vweird.f32 %v852
    %vm859 = vmor %vm857, %vm858
    %v860 = vsel %vm859, %v852, %v856
    %v861 = vand.u32 2147483647, %v836
    %vm862 = vcmp.eq.f32.partialorder %v861, 8.507059e+37
    %v863 = vand.u32 %v836, 2147483648
    %v864 = vor.u32 1.1754944e-38, %v863
    %v865 = vsel %vm862, %v864, %v860
    %v866 = vmul.f32 1.0, %v865
    %v867 = vadd.f32 %v387, %v809
    %v868 = vadd.f32 %v389, %v811
    %v869 = vxor.u32 %v867, 2147483648
    %v870 = vxor.u32 %v868, 2147483648
    %v871 = vmul.f32 %v869, 1.442695
    %v872 = vpow.pop %v871
    %v873 = vmul.f32 %v870, 1.442695
    %v874 = vpow.pop %v873
    %v875 = vadd.f32 %v872, 1.0
    %v876 = vadd.f32 %v874, 1.0
    %v877 = vrcp.pop %v875
    %v878 = vmul.f32 %v875, %v877
    %v879 = vsub.f32 1.0, %v878
    %v880 = vmul.f32 %v877, %v879
    %v881 = vadd.f32 %v877, %v880
    %vm882 = vweird.f32 %v875
    %vm883 = vweird.f32 %v877
    %vm884 = vmor %vm882, %vm883
    %v885 = vsel %vm884, %v877, %v881
    %v886 = vand.u32 2147483647, %v875
    %vm887 = vcmp.eq.f32.partialorder %v886, 8.507059e+37
    %v888 = vand.u32 %v875, 2147483648
    %v889 = vor.u32 1.1754944e-38, %v888
    %v890 = vsel %vm887, %v889, %v885
    %v891 = vmul.f32 1.0, %v890
    %v892 = vrcp.pop %v876
    %v893 = vmul.f32 %v876, %v892
    %v894 = vsub.f32 1.0, %v893
    %v895 = vmul.f32 %v892, %v894
    %v896 = vadd.f32 %v892, %v895
    %vm897 = vweird.f32 %v876
    %vm898 = vweird.f32 %v892
    %vm899 = vmor %vm897, %vm898
    %v900 = vsel %vm899, %v892, %v896
    %v901 = vand.u32 2147483647, %v876
    %vm902 = vcmp.eq.f32.partialorder %v901, 8.507059e+37
    %v903 = vand.u32 %v876, 2147483648
    %v904 = vor.u32 1.1754944e-38, %v903
    %v905 = vsel %vm902, %v904, %v900
    %v906 = vmul.f32 1.0, %v905
    %v907 = vadd.f32 %v823, %v757
    %v908 = vadd.f32 %v825, %v757
    %v909 = vmul.f32 %v851, %v907
    %v910 = vmul.f32 %v866, %v908
    %v911 = vadd.f32 %v436, %v909
    %v912 = vadd.f32 %v438, %v910
    %v913 = vtanh.pop %v911
    %v914 = vtanh.pop %v912
    %v915 = vsub.f32 1.0, %v891
    %v916 = vsub.f32 1.0, %v906
    %v917 = vmul.f32 %v915, %v913
    %v918 = vmul.f32 %v916, %v914
    %v919 = vmul.f32 %v891, %v773
    %v920 = vmul.f32 %v906, %v774
    %v921 = vadd.f32 %v917, %v919
    %v922 = vadd.f32 %v918, %v920
    %v923 = vpack.c.bf16 %v921, %v921
    %v924 = vpack.c.bf16 %v922, %v922
    %s925 = scalar_lea.vmem [#allocation10], 8
    %926 = vst [vmem:[%s925] sm:$0xf] %v923
    %927 = vst [vmem:[%s925 + $0x4] sm:$0xf] %v924
    %v930 = vunpack.c.l.b16 %v923
    %v931 = vunpack.c.l.b16 %v924
    %v932 = vpack.c.b16 %v931, %v930
    %934 = vmatpush.bf16.msra.mxu0 %v607
    %935 = vmatpush.bf16.msra.mxu0 %v604
    %936 = vmatpush.bf16.msra.mxu0 %v601
    %937 = vmatpush.bf16.msra.mxu0 %v598
    %938 = vmatpush.bf16.msra.mxu0 %v595
    %939 = vmatpush.bf16.msra.mxu0 %v592
    %940 = vmatpush.bf16.msra.mxu0 %v589
    %941 = vmatpush.bf16.msra.mxu0 %v586
    %942 = vmatmul.bf16.gmra.mxu0 %v932
    %v943 = vpop.f32.mrf.mxu0
    %v944 = vadd.f32 0.0, %v943
    %v945 = vpop.f32.mrf.mxu0
    %v946 = vadd.f32 0.0, %v945
    %947 = vdwg.mxu0
    %948 = vmatpush.bf16.msra.mxu0 %v608
    %949 = vmatpush.bf16.msra.mxu0 %v605
    %950 = vmatpush.bf16.msra.mxu0 %v602
    %951 = vmatpush.bf16.msra.mxu0 %v599
    %952 = vmatpush.bf16.msra.mxu0 %v596
    %953 = vmatpush.bf16.msra.mxu0 %v593
    %954 = vmatpush.bf16.msra.mxu0 %v590
    %955 = vmatpush.bf16.msra.mxu0 %v587
    %956 = vmatmul.bf16.gmra.mxu0 %v932
    %v957 = vpop.f32.mrf.mxu0
    %v958 = vadd.f32 0.0, %v957
    %v959 = vpop.f32.mrf.mxu0
    %v960 = vadd.f32 0.0, %v959
    %961 = vdwg.mxu0
    %962 = vmatpush.bf16.msra.mxu0 %v609
    %963 = vmatpush.bf16.msra.mxu0 %v606
    %964 = vmatpush.bf16.msra.mxu0 %v603
    %965 = vmatpush.bf16.msra.mxu0 %v600
    %966 = vmatpush.bf16.msra.mxu0 %v597
    %967 = vmatpush.bf16.msra.mxu0 %v594
    %968 = vmatpush.bf16.msra.mxu0 %v591
    %969 = vmatpush.bf16.msra.mxu0 %v588
    %970 = vmatmul.bf16.gmra.mxu0 %v932
    %v971 = vpop.f32.mrf.mxu0
    %v972 = vadd.f32 0.0, %v971
    %v973 = vpop.f32.mrf.mxu0
    %v974 = vadd.f32 0.0, %v973
    %975 = vdwg.mxu0
    %v976 = vadd.f32 %v343, %v944
    %v977 = vadd.f32 %v345, %v946
    %v978 = vxor.u32 %v976, 2147483648
    %v979 = vxor.u32 %v977, 2147483648
    %v980 = vmul.f32 %v978, 1.442695
    %v981 = vpow.pop %v980
    %v982 = vmul.f32 %v979, 1.442695
    %v983 = vpow.pop %v982
    %v984 = vadd.f32 %v981, 1.0
    %v985 = vadd.f32 %v983, 1.0
    %v986 = vrcp.pop %v984
    %v987 = vmul.f32 %v984, %v986
    %v988 = vsub.f32 1.0, %v987
    %v989 = vmul.f32 %v986, %v988
    %v990 = vadd.f32 %v986, %v989
    %vm991 = vweird.f32 %v984
    %vm992 = vweird.f32 %v986
    %vm993 = vmor %vm991, %vm992
    %v994 = vsel %vm993, %v986, %v990
    %v995 = vand.u32 2147483647, %v984
    %vm996 = vcmp.eq.f32.partialorder %v995, 8.507059e+37
    %v997 = vand.u32 %v984, 2147483648
    %v998 = vor.u32 1.1754944e-38, %v997
    %v999 = vsel %vm996, %v998, %v994
    %v1000 = vmul.f32 1.0, %v999
    %v1001 = vrcp.pop %v985
    %v1002 = vmul.f32 %v985, %v1001
    %v1003 = vsub.f32 1.0, %v1002
    %v1004 = vmul.f32 %v1001, %v1003
    %v1005 = vadd.f32 %v1001, %v1004
    %vm1006 = vweird.f32 %v985
    %vm1007 = vweird.f32 %v1001
    %vm1008 = vmor %vm1006, %vm1007
    %v1009 = vsel %vm1008, %v1001, %v1005
    %v1010 = vand.u32 2147483647, %v985
    %vm1011 = vcmp.eq.f32.partialorder %v1010, 8.507059e+37
    %v1012 = vand.u32 %v985, 2147483648
    %v1013 = vor.u32 1.1754944e-38, %v1012
    %v1014 = vsel %vm1011, %v1013, %v1009
    %v1015 = vmul.f32 1.0, %v1014
    %v1016 = vadd.f32 %v392, %v958
    %v1017 = vadd.f32 %v394, %v960
    %v1018 = vxor.u32 %v1016, 2147483648
    %v1019 = vxor.u32 %v1017, 2147483648
    %v1020 = vmul.f32 %v1018, 1.442695
    %v1021 = vpow.pop %v1020
    %v1022 = vmul.f32 %v1019, 1.442695
    %v1023 = vpow.pop %v1022
    %v1024 = vadd.f32 %v1021, 1.0
    %v1025 = vadd.f32 %v1023, 1.0
    %v1026 = vrcp.pop %v1024
    %v1027 = vmul.f32 %v1024, %v1026
    %v1028 = vsub.f32 1.0, %v1027
    %v1029 = vmul.f32 %v1026, %v1028
    %v1030 = vadd.f32 %v1026, %v1029
    %vm1031 = vweird.f32 %v1024
    %vm1032 = vweird.f32 %v1026
    %vm1033 = vmor %vm1031, %vm1032
    %v1034 = vsel %vm1033, %v1026, %v1030
    %v1035 = vand.u32 2147483647, %v1024
    %vm1036 = vcmp.eq.f32.partialorder %v1035, 8.507059e+37
    %v1037 = vand.u32 %v1024, 2147483648
    %v1038 = vor.u32 1.1754944e-38, %v1037
    %v1039 = vsel %vm1036, %v1038, %v1034
    %v1040 = vmul.f32 1.0, %v1039
    %v1041 = vrcp.pop %v1025
    %v1042 = vmul.f32 %v1025, %v1041
    %v1043 = vsub.f32 1.0, %v1042
    %v1044 = vmul.f32 %v1041, %v1043
    %v1045 = vadd.f32 %v1041, %v1044
    %vm1046 = vweird.f32 %v1025
    %vm1047 = vweird.f32 %v1041
    %vm1048 = vmor %vm1046, %vm1047
    %v1049 = vsel %vm1048, %v1041, %v1045
    %v1050 = vand.u32 2147483647, %v1025
    %vm1051 = vcmp.eq.f32.partialorder %v1050, 8.507059e+37
    %v1052 = vand.u32 %v1025, 2147483648
    %v1053 = vor.u32 1.1754944e-38, %v1052
    %v1054 = vsel %vm1051, %v1053, %v1049
    %v1055 = vmul.f32 1.0, %v1054
    %v1056 = vadd.f32 %v972, %v757
    %v1057 = vadd.f32 %v974, %v757
    %v1058 = vmul.f32 %v1000, %v1056
    %v1059 = vmul.f32 %v1015, %v1057
    %v1060 = vadd.f32 %v441, %v1058
    %v1061 = vadd.f32 %v443, %v1059
    %v1062 = vtanh.pop %v1060
    %v1063 = vtanh.pop %v1061
    %v1064 = vsub.f32 1.0, %v1040
    %v1065 = vsub.f32 1.0, %v1055
    %v1066 = vmul.f32 %v1064, %v1062
    %v1067 = vmul.f32 %v1065, %v1063
    %v1068 = vmul.f32 %v1040, %v921
    %v1069 = vmul.f32 %v1055, %v922
    %v1070 = vadd.f32 %v1066, %v1068
    %v1071 = vadd.f32 %v1067, %v1069
    %v1072 = vpack.c.bf16 %v1070, %v1070
    %v1073 = vpack.c.bf16 %v1071, %v1071
    %s1074 = scalar_lea.vmem [#allocation10], 16
    %1075 = vst [vmem:[%s1074] sm:$0xf] %v1072
    %1076 = vst [vmem:[%s1074 + $0x4] sm:$0xf] %v1073
    %v1079 = vunpack.c.l.b16 %v1072
    %v1080 = vunpack.c.l.b16 %v1073
    %v1081 = vpack.c.b16 %v1080, %v1079
    %1083 = vmatpush.bf16.msra.mxu0 %v607
    %1084 = vmatpush.bf16.msra.mxu0 %v604
    %1085 = vmatpush.bf16.msra.mxu0 %v601
    %1086 = vmatpush.bf16.msra.mxu0 %v598
    %1087 = vmatpush.bf16.msra.mxu0 %v595
    %1088 = vmatpush.bf16.msra.mxu0 %v592
    %1089 = vmatpush.bf16.msra.mxu0 %v589
    %1090 = vmatpush.bf16.msra.mxu0 %v586
    %1091 = vmatmul.bf16.gmra.mxu0 %v1081
    %v1092 = vpop.f32.mrf.mxu0
    %v1093 = vadd.f32 0.0, %v1092
    %v1094 = vpop.f32.mrf.mxu0
    %v1095 = vadd.f32 0.0, %v1094
    %1096 = vdwg.mxu0
    %1097 = vmatpush.bf16.msra.mxu0 %v608
    %1098 = vmatpush.bf16.msra.mxu0 %v605
    %1099 = vmatpush.bf16.msra.mxu0 %v602
    %1100 = vmatpush.bf16.msra.mxu0 %v599
    %1101 = vmatpush.bf16.msra.mxu0 %v596
    %1102 = vmatpush.bf16.msra.mxu0 %v593
    %1103 = vmatpush.bf16.msra.mxu0 %v590
    %1104 = vmatpush.bf16.msra.mxu0 %v587
    %1105 = vmatmul.bf16.gmra.mxu0 %v1081
    %v1106 = vpop.f32.mrf.mxu0
    %v1107 = vadd.f32 0.0, %v1106
    %v1108 = vpop.f32.mrf.mxu0
    %v1109 = vadd.f32 0.0, %v1108
    %1110 = vdwg.mxu0
    %1111 = vmatpush.bf16.msra.mxu0 %v609
    %1112 = vmatpush.bf16.msra.mxu0 %v606
    %1113 = vmatpush.bf16.msra.mxu0 %v603
    %1114 = vmatpush.bf16.msra.mxu0 %v600
    %1115 = vmatpush.bf16.msra.mxu0 %v597
    %1116 = vmatpush.bf16.msra.mxu0 %v594
    %1117 = vmatpush.bf16.msra.mxu0 %v591
    %1118 = vmatpush.bf16.msra.mxu0 %v588
    %1119 = vmatmul.bf16.gmra.mxu0 %v1081
    %v1120 = vpop.f32.mrf.mxu0
    %v1121 = vadd.f32 0.0, %v1120
    %v1122 = vpop.f32.mrf.mxu0
    %v1123 = vadd.f32 0.0, %v1122
    %1124 = vdwg.mxu0
    %v1125 = vadd.f32 %v348, %v1093
    %v1126 = vadd.f32 %v350, %v1095
    %v1127 = vxor.u32 %v1125, 2147483648
    %v1128 = vxor.u32 %v1126, 2147483648
    %v1129 = vmul.f32 %v1127, 1.442695
    %v1130 = vpow.pop %v1129
    %v1131 = vmul.f32 %v1128, 1.442695
    %v1132 = vpow.pop %v1131
    %v1133 = vadd.f32 %v1130, 1.0
    %v1134 = vadd.f32 %v1132, 1.0
    %v1135 = vrcp.pop %v1133
    %v1136 = vmul.f32 %v1133, %v1135
    %v1137 = vsub.f32 1.0, %v1136
    %v1138 = vmul.f32 %v1135, %v1137
    %v1139 = vadd.f32 %v1135, %v1138
    %vm1140 = vweird.f32 %v1133
    %vm1141 = vweird.f32 %v1135
    %vm1142 = vmor %vm1140, %vm1141
    %v1143 = vsel %vm1142, %v1135, %v1139
    %v1144 = vand.u32 2147483647, %v1133
    %vm1145 = vcmp.eq.f32.partialorder %v1144, 8.507059e+37
    %v1146 = vand.u32 %v1133, 2147483648
    %v1147 = vor.u32 1.1754944e-38, %v1146
    %v1148 = vsel %vm1145, %v1147, %v1143
    %v1149 = vmul.f32 1.0, %v1148
    %v1150 = vrcp.pop %v1134
    %v1151 = vmul.f32 %v1134, %v1150
    %v1152 = vsub.f32 1.0, %v1151
    %v1153 = vmul.f32 %v1150, %v1152
    %v1154 = vadd.f32 %v1150, %v1153
    %vm1155 = vweird.f32 %v1134
    %vm1156 = vweird.f32 %v1150
    %vm1157 = vmor %vm1155, %vm1156
    %v1158 = vsel %vm1157, %v1150, %v1154
    %v1159 = vand.u32 2147483647, %v1134
    %vm1160 = vcmp.eq.f32.partialorder %v1159, 8.507059e+37
    %v1161 = vand.u32 %v1134, 2147483648
    %v1162 = vor.u32 1.1754944e-38, %v1161
    %v1163 = vsel %vm1160, %v1162, %v1158
    %v1164 = vmul.f32 1.0, %v1163
    %v1165 = vadd.f32 %v397, %v1107
    %v1166 = vadd.f32 %v399, %v1109
    %v1167 = vxor.u32 %v1165, 2147483648
    %v1168 = vxor.u32 %v1166, 2147483648
    %v1169 = vmul.f32 %v1167, 1.442695
    %v1170 = vpow.pop %v1169
    %v1171 = vmul.f32 %v1168, 1.442695
    %v1172 = vpow.pop %v1171
    %v1173 = vadd.f32 %v1170, 1.0
    %v1174 = vadd.f32 %v1172, 1.0
    %v1175 = vrcp.pop %v1173
    %v1176 = vmul.f32 %v1173, %v1175
    %v1177 = vsub.f32 1.0, %v1176
    %v1178 = vmul.f32 %v1175, %v1177
    %v1179 = vadd.f32 %v1175, %v1178
    %vm1180 = vweird.f32 %v1173
    %vm1181 = vweird.f32 %v1175
    %vm1182 = vmor %vm1180, %vm1181
    %v1183 = vsel %vm1182, %v1175, %v1179
    %v1184 = vand.u32 2147483647, %v1173
    %vm1185 = vcmp.eq.f32.partialorder %v1184, 8.507059e+37
    %v1186 = vand.u32 %v1173, 2147483648
    %v1187 = vor.u32 1.1754944e-38, %v1186
    %v1188 = vsel %vm1185, %v1187, %v1183
    %v1189 = vmul.f32 1.0, %v1188
    %v1190 = vrcp.pop %v1174
    %v1191 = vmul.f32 %v1174, %v1190
    %v1192 = vsub.f32 1.0, %v1191
    %v1193 = vmul.f32 %v1190, %v1192
    %v1194 = vadd.f32 %v1190, %v1193
    %vm1195 = vweird.f32 %v1174
    %vm1196 = vweird.f32 %v1190
    %vm1197 = vmor %vm1195, %vm1196
    %v1198 = vsel %vm1197, %v1190, %v1194
    %v1199 = vand.u32 2147483647, %v1174
    %vm1200 = vcmp.eq.f32.partialorder %v1199, 8.507059e+37
    %v1201 = vand.u32 %v1174, 2147483648
    %v1202 = vor.u32 1.1754944e-38, %v1201
    %v1203 = vsel %vm1200, %v1202, %v1198
    %v1204 = vmul.f32 1.0, %v1203
    %v1205 = vadd.f32 %v1121, %v757
    %v1206 = vadd.f32 %v1123, %v757
    %v1207 = vmul.f32 %v1149, %v1205
    %v1208 = vmul.f32 %v1164, %v1206
    %v1209 = vadd.f32 %v446, %v1207
    %v1210 = vadd.f32 %v448, %v1208
    %v1211 = vtanh.pop %v1209
    %v1212 = vtanh.pop %v1210
    %v1213 = vsub.f32 1.0, %v1189
    %v1214 = vsub.f32 1.0, %v1204
    %v1215 = vmul.f32 %v1213, %v1211
    %v1216 = vmul.f32 %v1214, %v1212
    %v1217 = vmul.f32 %v1189, %v1070
    %v1218 = vmul.f32 %v1204, %v1071
    %v1219 = vadd.f32 %v1215, %v1217
    %v1220 = vadd.f32 %v1216, %v1218
    %v1221 = vpack.c.bf16 %v1219, %v1219
    %v1222 = vpack.c.bf16 %v1220, %v1220
    %s1223 = scalar_lea.vmem [#allocation10], 24
    %1224 = vst [vmem:[%s1223] sm:$0xf] %v1221
    %1225 = vst [vmem:[%s1223 + $0x4] sm:$0xf] %v1222
    %v1228 = vunpack.c.l.b16 %v1221
    %v1229 = vunpack.c.l.b16 %v1222
    %v1230 = vpack.c.b16 %v1229, %v1228
    %1232 = vmatpush.bf16.msra.mxu0 %v607
    %1233 = vmatpush.bf16.msra.mxu0 %v604
    %1234 = vmatpush.bf16.msra.mxu0 %v601
    %1235 = vmatpush.bf16.msra.mxu0 %v598
    %1236 = vmatpush.bf16.msra.mxu0 %v595
    %1237 = vmatpush.bf16.msra.mxu0 %v592
    %1238 = vmatpush.bf16.msra.mxu0 %v589
    %1239 = vmatpush.bf16.msra.mxu0 %v586
    %1240 = vmatmul.bf16.gmra.mxu0 %v1230
    %v1241 = vpop.f32.mrf.mxu0
    %v1242 = vadd.f32 0.0, %v1241
    %v1243 = vpop.f32.mrf.mxu0
    %v1244 = vadd.f32 0.0, %v1243
    %1245 = vdwg.mxu0
    %1246 = vmatpush.bf16.msra.mxu0 %v608
    %1247 = vmatpush.bf16.msra.mxu0 %v605
    %1248 = vmatpush.bf16.msra.mxu0 %v602
    %1249 = vmatpush.bf16.msra.mxu0 %v599
    %1250 = vmatpush.bf16.msra.mxu0 %v596
    %1251 = vmatpush.bf16.msra.mxu0 %v593
    %1252 = vmatpush.bf16.msra.mxu0 %v590
    %1253 = vmatpush.bf16.msra.mxu0 %v587
    %1254 = vmatmul.bf16.gmra.mxu0 %v1230
    %v1255 = vpop.f32.mrf.mxu0
    %v1256 = vadd.f32 0.0, %v1255
    %v1257 = vpop.f32.mrf.mxu0
    %v1258 = vadd.f32 0.0, %v1257
    %1259 = vdwg.mxu0
    %1260 = vmatpush.bf16.msra.mxu0 %v609
    %1261 = vmatpush.bf16.msra.mxu0 %v606
    %1262 = vmatpush.bf16.msra.mxu0 %v603
    %1263 = vmatpush.bf16.msra.mxu0 %v600
    %1264 = vmatpush.bf16.msra.mxu0 %v597
    %1265 = vmatpush.bf16.msra.mxu0 %v594
    %1266 = vmatpush.bf16.msra.mxu0 %v591
    %1267 = vmatpush.bf16.msra.mxu0 %v588
    %1268 = vmatmul.bf16.gmra.mxu0 %v1230
    %v1269 = vpop.f32.mrf.mxu0
    %v1270 = vadd.f32 0.0, %v1269
    %v1271 = vpop.f32.mrf.mxu0
    %v1272 = vadd.f32 0.0, %v1271
    %1273 = vdwg.mxu0
    %v1274 = vadd.f32 %v353, %v1242
    %v1275 = vadd.f32 %v355, %v1244
    %v1276 = vxor.u32 %v1274, 2147483648
    %v1277 = vxor.u32 %v1275, 2147483648
    %v1278 = vmul.f32 %v1276, 1.442695
    %v1279 = vpow.pop %v1278
    %v1280 = vmul.f32 %v1277, 1.442695
    %v1281 = vpow.pop %v1280
    %v1282 = vadd.f32 %v1279, 1.0
    %v1283 = vadd.f32 %v1281, 1.0
    %v1284 = vrcp.pop %v1282
    %v1285 = vmul.f32 %v1282, %v1284
    %v1286 = vsub.f32 1.0, %v1285
    %v1287 = vmul.f32 %v1284, %v1286
    %v1288 = vadd.f32 %v1284, %v1287
    %vm1289 = vweird.f32 %v1282
    %vm1290 = vweird.f32 %v1284
    %vm1291 = vmor %vm1289, %vm1290
    %v1292 = vsel %vm1291, %v1284, %v1288
    %v1293 = vand.u32 2147483647, %v1282
    %vm1294 = vcmp.eq.f32.partialorder %v1293, 8.507059e+37
    %v1295 = vand.u32 %v1282, 2147483648
    %v1296 = vor.u32 1.1754944e-38, %v1295
    %v1297 = vsel %vm1294, %v1296, %v1292
    %v1298 = vmul.f32 1.0, %v1297
    %v1299 = vrcp.pop %v1283
    %v1300 = vmul.f32 %v1283, %v1299
    %v1301 = vsub.f32 1.0, %v1300
    %v1302 = vmul.f32 %v1299, %v1301
    %v1303 = vadd.f32 %v1299, %v1302
    %vm1304 = vweird.f32 %v1283
    %vm1305 = vweird.f32 %v1299
    %vm1306 = vmor %vm1304, %vm1305
    %v1307 = vsel %vm1306, %v1299, %v1303
    %v1308 = vand.u32 2147483647, %v1283
    %vm1309 = vcmp.eq.f32.partialorder %v1308, 8.507059e+37
    %v1310 = vand.u32 %v1283, 2147483648
    %v1311 = vor.u32 1.1754944e-38, %v1310
    %v1312 = vsel %vm1309, %v1311, %v1307
    %v1313 = vmul.f32 1.0, %v1312
    %v1314 = vadd.f32 %v402, %v1256
    %v1315 = vadd.f32 %v404, %v1258
    %v1316 = vxor.u32 %v1314, 2147483648
    %v1317 = vxor.u32 %v1315, 2147483648
    %v1318 = vmul.f32 %v1316, 1.442695
    %v1319 = vpow.pop %v1318
    %v1320 = vmul.f32 %v1317, 1.442695
    %v1321 = vpow.pop %v1320
    %v1322 = vadd.f32 %v1319, 1.0
    %v1323 = vadd.f32 %v1321, 1.0
    %v1324 = vrcp.pop %v1322
    %v1325 = vmul.f32 %v1322, %v1324
    %v1326 = vsub.f32 1.0, %v1325
    %v1327 = vmul.f32 %v1324, %v1326
    %v1328 = vadd.f32 %v1324, %v1327
    %vm1329 = vweird.f32 %v1322
    %vm1330 = vweird.f32 %v1324
    %vm1331 = vmor %vm1329, %vm1330
    %v1332 = vsel %vm1331, %v1324, %v1328
    %v1333 = vand.u32 2147483647, %v1322
    %vm1334 = vcmp.eq.f32.partialorder %v1333, 8.507059e+37
    %v1335 = vand.u32 %v1322, 2147483648
    %v1336 = vor.u32 1.1754944e-38, %v1335
    %v1337 = vsel %vm1334, %v1336, %v1332
    %v1338 = vmul.f32 1.0, %v1337
    %v1339 = vrcp.pop %v1323
    %v1340 = vmul.f32 %v1323, %v1339
    %v1341 = vsub.f32 1.0, %v1340
    %v1342 = vmul.f32 %v1339, %v1341
    %v1343 = vadd.f32 %v1339, %v1342
    %vm1344 = vweird.f32 %v1323
    %vm1345 = vweird.f32 %v1339
    %vm1346 = vmor %vm1344, %vm1345
    %v1347 = vsel %vm1346, %v1339, %v1343
    %v1348 = vand.u32 2147483647, %v1323
    %vm1349 = vcmp.eq.f32.partialorder %v1348, 8.507059e+37
    %v1350 = vand.u32 %v1323, 2147483648
    %v1351 = vor.u32 1.1754944e-38, %v1350
    %v1352 = vsel %vm1349, %v1351, %v1347
    %v1353 = vmul.f32 1.0, %v1352
    %v1354 = vadd.f32 %v1270, %v757
    %v1355 = vadd.f32 %v1272, %v757
    %v1356 = vmul.f32 %v1298, %v1354
    %v1357 = vmul.f32 %v1313, %v1355
    %v1358 = vadd.f32 %v451, %v1356
    %v1359 = vadd.f32 %v453, %v1357
    %v1360 = vtanh.pop %v1358
    %v1361 = vtanh.pop %v1359
    %v1362 = vsub.f32 1.0, %v1338
    %v1363 = vsub.f32 1.0, %v1353
    %v1364 = vmul.f32 %v1362, %v1360
    %v1365 = vmul.f32 %v1363, %v1361
    %v1366 = vmul.f32 %v1338, %v1219
    %v1367 = vmul.f32 %v1353, %v1220
    %v1368 = vadd.f32 %v1364, %v1366
    %v1369 = vadd.f32 %v1365, %v1367
    %v1370 = vpack.c.bf16 %v1368, %v1368
    %v1371 = vpack.c.bf16 %v1369, %v1369
    %s1372 = scalar_lea.vmem [#allocation10], 32
    %1373 = vst [vmem:[%s1372] sm:$0xf] %v1370
    %1374 = vst [vmem:[%s1372 + $0x4] sm:$0xf] %v1371
    %v1377 = vunpack.c.l.b16 %v1370
    %v1378 = vunpack.c.l.b16 %v1371
    %v1379 = vpack.c.b16 %v1378, %v1377
    %1381 = vmatpush.bf16.msra.mxu0 %v607
    %1382 = vmatpush.bf16.msra.mxu0 %v604
    %1383 = vmatpush.bf16.msra.mxu0 %v601
    %1384 = vmatpush.bf16.msra.mxu0 %v598
    %1385 = vmatpush.bf16.msra.mxu0 %v595
    %1386 = vmatpush.bf16.msra.mxu0 %v592
    %1387 = vmatpush.bf16.msra.mxu0 %v589
    %1388 = vmatpush.bf16.msra.mxu0 %v586
    %1389 = vmatmul.bf16.gmra.mxu0 %v1379
    %v1390 = vpop.f32.mrf.mxu0
    %v1391 = vadd.f32 0.0, %v1390
    %v1392 = vpop.f32.mrf.mxu0
    %v1393 = vadd.f32 0.0, %v1392
    %1394 = vdwg.mxu0
    %1395 = vmatpush.bf16.msra.mxu0 %v608
    %1396 = vmatpush.bf16.msra.mxu0 %v605
    %1397 = vmatpush.bf16.msra.mxu0 %v602
    %1398 = vmatpush.bf16.msra.mxu0 %v599
    %1399 = vmatpush.bf16.msra.mxu0 %v596
    %1400 = vmatpush.bf16.msra.mxu0 %v593
    %1401 = vmatpush.bf16.msra.mxu0 %v590
    %1402 = vmatpush.bf16.msra.mxu0 %v587
    %1403 = vmatmul.bf16.gmra.mxu0 %v1379
    %v1404 = vpop.f32.mrf.mxu0
    %v1405 = vadd.f32 0.0, %v1404
    %v1406 = vpop.f32.mrf.mxu0
    %v1407 = vadd.f32 0.0, %v1406
    %1408 = vdwg.mxu0
    %1409 = vmatpush.bf16.msra.mxu0 %v609
    %1410 = vmatpush.bf16.msra.mxu0 %v606
    %1411 = vmatpush.bf16.msra.mxu0 %v603
    %1412 = vmatpush.bf16.msra.mxu0 %v600
    %1413 = vmatpush.bf16.msra.mxu0 %v597
    %1414 = vmatpush.bf16.msra.mxu0 %v594
    %1415 = vmatpush.bf16.msra.mxu0 %v591
    %1416 = vmatpush.bf16.msra.mxu0 %v588
    %1417 = vmatmul.bf16.gmra.mxu0 %v1379
    %v1418 = vpop.f32.mrf.mxu0
    %v1419 = vadd.f32 0.0, %v1418
    %v1420 = vpop.f32.mrf.mxu0
    %v1421 = vadd.f32 0.0, %v1420
    %1422 = vdwg.mxu0
    %v1423 = vadd.f32 %v358, %v1391
    %v1424 = vadd.f32 %v360, %v1393
    %v1425 = vxor.u32 %v1423, 2147483648
    %v1426 = vxor.u32 %v1424, 2147483648
    %v1427 = vmul.f32 %v1425, 1.442695
    %v1428 = vpow.pop %v1427
    %v1429 = vmul.f32 %v1426, 1.442695
    %v1430 = vpow.pop %v1429
    %v1431 = vadd.f32 %v1428, 1.0
    %v1432 = vadd.f32 %v1430, 1.0
    %v1433 = vrcp.pop %v1431
    %v1434 = vmul.f32 %v1431, %v1433
    %v1435 = vsub.f32 1.0, %v1434
    %v1436 = vmul.f32 %v1433, %v1435
    %v1437 = vadd.f32 %v1433, %v1436
    %vm1438 = vweird.f32 %v1431
    %vm1439 = vweird.f32 %v1433
    %vm1440 = vmor %vm1438, %vm1439
    %v1441 = vsel %vm1440, %v1433, %v1437
    %v1442 = vand.u32 2147483647, %v1431
    %vm1443 = vcmp.eq.f32.partialorder %v1442, 8.507059e+37
    %v1444 = vand.u32 %v1431, 2147483648
    %v1445 = vor.u32 1.1754944e-38, %v1444
    %v1446 = vsel %vm1443, %v1445, %v1441
    %v1447 = vmul.f32 1.0, %v1446
    %v1448 = vrcp.pop %v1432
    %v1449 = vmul.f32 %v1432, %v1448
    %v1450 = vsub.f32 1.0, %v1449
    %v1451 = vmul.f32 %v1448, %v1450
    %v1452 = vadd.f32 %v1448, %v1451
    %vm1453 = vweird.f32 %v1432
    %vm1454 = vweird.f32 %v1448
    %vm1455 = vmor %vm1453, %vm1454
    %v1456 = vsel %vm1455, %v1448, %v1452
    %v1457 = vand.u32 2147483647, %v1432
    %vm1458 = vcmp.eq.f32.partialorder %v1457, 8.507059e+37
    %v1459 = vand.u32 %v1432, 2147483648
    %v1460 = vor.u32 1.1754944e-38, %v1459
    %v1461 = vsel %vm1458, %v1460, %v1456
    %v1462 = vmul.f32 1.0, %v1461
    %v1463 = vadd.f32 %v407, %v1405
    %v1464 = vadd.f32 %v409, %v1407
    %v1465 = vxor.u32 %v1463, 2147483648
    %v1466 = vxor.u32 %v1464, 2147483648
    %v1467 = vmul.f32 %v1465, 1.442695
    %v1468 = vpow.pop %v1467
    %v1469 = vmul.f32 %v1466, 1.442695
    %v1470 = vpow.pop %v1469
    %v1471 = vadd.f32 %v1468, 1.0
    %v1472 = vadd.f32 %v1470, 1.0
    %v1473 = vrcp.pop %v1471
    %v1474 = vmul.f32 %v1471, %v1473
    %v1475 = vsub.f32 1.0, %v1474
    %v1476 = vmul.f32 %v1473, %v1475
    %v1477 = vadd.f32 %v1473, %v1476
    %vm1478 = vweird.f32 %v1471
    %vm1479 = vweird.f32 %v1473
    %vm1480 = vmor %vm1478, %vm1479
    %v1481 = vsel %vm1480, %v1473, %v1477
    %v1482 = vand.u32 2147483647, %v1471
    %vm1483 = vcmp.eq.f32.partialorder %v1482, 8.507059e+37
    %v1484 = vand.u32 %v1471, 2147483648
    %v1485 = vor.u32 1.1754944e-38, %v1484
    %v1486 = vsel %vm1483, %v1485, %v1481
    %v1487 = vmul.f32 1.0, %v1486
    %v1488 = vrcp.pop %v1472
    %v1489 = vmul.f32 %v1472, %v1488
    %v1490 = vsub.f32 1.0, %v1489
    %v1491 = vmul.f32 %v1488, %v1490
    %v1492 = vadd.f32 %v1488, %v1491
    %vm1493 = vweird.f32 %v1472
    %vm1494 = vweird.f32 %v1488
    %vm1495 = vmor %vm1493, %vm1494
    %v1496 = vsel %vm1495, %v1488, %v1492
    %v1497 = vand.u32 2147483647, %v1472
    %vm1498 = vcmp.eq.f32.partialorder %v1497, 8.507059e+37
    %v1499 = vand.u32 %v1472, 2147483648
    %v1500 = vor.u32 1.1754944e-38, %v1499
    %v1501 = vsel %vm1498, %v1500, %v1496
    %v1502 = vmul.f32 1.0, %v1501
    %v1503 = vadd.f32 %v1419, %v757
    %v1504 = vadd.f32 %v1421, %v757
    %v1505 = vmul.f32 %v1447, %v1503
    %v1506 = vmul.f32 %v1462, %v1504
    %v1507 = vadd.f32 %v456, %v1505
    %v1508 = vadd.f32 %v458, %v1506
    %v1509 = vtanh.pop %v1507
    %v1510 = vtanh.pop %v1508
    %v1511 = vsub.f32 1.0, %v1487
    %v1512 = vsub.f32 1.0, %v1502
    %v1513 = vmul.f32 %v1511, %v1509
    %v1514 = vmul.f32 %v1512, %v1510
    %v1515 = vmul.f32 %v1487, %v1368
    %v1516 = vmul.f32 %v1502, %v1369
    %v1517 = vadd.f32 %v1513, %v1515
    %v1518 = vadd.f32 %v1514, %v1516
    %v1519 = vpack.c.bf16 %v1517, %v1517
    %v1520 = vpack.c.bf16 %v1518, %v1518
    %s1521 = scalar_lea.vmem [#allocation10], 40
    %1522 = vst [vmem:[%s1521] sm:$0xf] %v1519
    %1523 = vst [vmem:[%s1521 + $0x4] sm:$0xf] %v1520
    %v1526 = vunpack.c.l.b16 %v1519
    %v1527 = vunpack.c.l.b16 %v1520
    %v1528 = vpack.c.b16 %v1527, %v1526
    %1530 = vmatpush.bf16.msra.mxu0 %v607
    %1531 = vmatpush.bf16.msra.mxu0 %v604
    %1532 = vmatpush.bf16.msra.mxu0 %v601
    %1533 = vmatpush.bf16.msra.mxu0 %v598
    %1534 = vmatpush.bf16.msra.mxu0 %v595
    %1535 = vmatpush.bf16.msra.mxu0 %v592
    %1536 = vmatpush.bf16.msra.mxu0 %v589
    %1537 = vmatpush.bf16.msra.mxu0 %v586
    %1538 = vmatmul.bf16.gmra.mxu0 %v1528
    %v1539 = vpop.f32.mrf.mxu0
    %v1540 = vadd.f32 0.0, %v1539
    %v1541 = vpop.f32.mrf.mxu0
    %v1542 = vadd.f32 0.0, %v1541
    %1543 = vdwg.mxu0
    %1544 = vmatpush.bf16.msra.mxu0 %v608
    %1545 = vmatpush.bf16.msra.mxu0 %v605
    %1546 = vmatpush.bf16.msra.mxu0 %v602
    %1547 = vmatpush.bf16.msra.mxu0 %v599
    %1548 = vmatpush.bf16.msra.mxu0 %v596
    %1549 = vmatpush.bf16.msra.mxu0 %v593
    %1550 = vmatpush.bf16.msra.mxu0 %v590
    %1551 = vmatpush.bf16.msra.mxu0 %v587
    %1552 = vmatmul.bf16.gmra.mxu0 %v1528
    %v1553 = vpop.f32.mrf.mxu0
    %v1554 = vadd.f32 0.0, %v1553
    %v1555 = vpop.f32.mrf.mxu0
    %v1556 = vadd.f32 0.0, %v1555
    %1557 = vdwg.mxu0
    %1558 = vmatpush.bf16.msra.mxu0 %v609
    %1559 = vmatpush.bf16.msra.mxu0 %v606
    %1560 = vmatpush.bf16.msra.mxu0 %v603
    %1561 = vmatpush.bf16.msra.mxu0 %v600
    %1562 = vmatpush.bf16.msra.mxu0 %v597
    %1563 = vmatpush.bf16.msra.mxu0 %v594
    %1564 = vmatpush.bf16.msra.mxu0 %v591
    %1565 = vmatpush.bf16.msra.mxu0 %v588
    %1566 = vmatmul.bf16.gmra.mxu0 %v1528
    %v1567 = vpop.f32.mrf.mxu0
    %v1568 = vadd.f32 0.0, %v1567
    %v1569 = vpop.f32.mrf.mxu0
    %v1570 = vadd.f32 0.0, %v1569
    %1571 = vdwg.mxu0
    %v1572 = vadd.f32 %v363, %v1540
    %v1573 = vadd.f32 %v365, %v1542
    %v1574 = vxor.u32 %v1572, 2147483648
    %v1575 = vxor.u32 %v1573, 2147483648
    %v1576 = vmul.f32 %v1574, 1.442695
    %v1577 = vpow.pop %v1576
    %v1578 = vmul.f32 %v1575, 1.442695
    %v1579 = vpow.pop %v1578
    %v1580 = vadd.f32 %v1577, 1.0
    %v1581 = vadd.f32 %v1579, 1.0
    %v1582 = vrcp.pop %v1580
    %v1583 = vmul.f32 %v1580, %v1582
    %v1584 = vsub.f32 1.0, %v1583
    %v1585 = vmul.f32 %v1582, %v1584
    %v1586 = vadd.f32 %v1582, %v1585
    %vm1587 = vweird.f32 %v1580
    %vm1588 = vweird.f32 %v1582
    %vm1589 = vmor %vm1587, %vm1588
    %v1590 = vsel %vm1589, %v1582, %v1586
    %v1591 = vand.u32 2147483647, %v1580
    %vm1592 = vcmp.eq.f32.partialorder %v1591, 8.507059e+37
    %v1593 = vand.u32 %v1580, 2147483648
    %v1594 = vor.u32 1.1754944e-38, %v1593
    %v1595 = vsel %vm1592, %v1594, %v1590
    %v1596 = vmul.f32 1.0, %v1595
    %v1597 = vrcp.pop %v1581
    %v1598 = vmul.f32 %v1581, %v1597
    %v1599 = vsub.f32 1.0, %v1598
    %v1600 = vmul.f32 %v1597, %v1599
    %v1601 = vadd.f32 %v1597, %v1600
    %vm1602 = vweird.f32 %v1581
    %vm1603 = vweird.f32 %v1597
    %vm1604 = vmor %vm1602, %vm1603
    %v1605 = vsel %vm1604, %v1597, %v1601
    %v1606 = vand.u32 2147483647, %v1581
    %vm1607 = vcmp.eq.f32.partialorder %v1606, 8.507059e+37
    %v1608 = vand.u32 %v1581, 2147483648
    %v1609 = vor.u32 1.1754944e-38, %v1608
    %v1610 = vsel %vm1607, %v1609, %v1605
    %v1611 = vmul.f32 1.0, %v1610
    %v1612 = vadd.f32 %v412, %v1554
    %v1613 = vadd.f32 %v414, %v1556
    %v1614 = vxor.u32 %v1612, 2147483648
    %v1615 = vxor.u32 %v1613, 2147483648
    %v1616 = vmul.f32 %v1614, 1.442695
    %v1617 = vpow.pop %v1616
    %v1618 = vmul.f32 %v1615, 1.442695
    %v1619 = vpow.pop %v1618
    %v1620 = vadd.f32 %v1617, 1.0
    %v1621 = vadd.f32 %v1619, 1.0
    %v1622 = vrcp.pop %v1620
    %v1623 = vmul.f32 %v1620, %v1622
    %v1624 = vsub.f32 1.0, %v1623
    %v1625 = vmul.f32 %v1622, %v1624
    %v1626 = vadd.f32 %v1622, %v1625
    %vm1627 = vweird.f32 %v1620
    %vm1628 = vweird.f32 %v1622
    %vm1629 = vmor %vm1627, %vm1628
    %v1630 = vsel %vm1629, %v1622, %v1626
    %v1631 = vand.u32 2147483647, %v1620
    %vm1632 = vcmp.eq.f32.partialorder %v1631, 8.507059e+37
    %v1633 = vand.u32 %v1620, 2147483648
    %v1634 = vor.u32 1.1754944e-38, %v1633
    %v1635 = vsel %vm1632, %v1634, %v1630
    %v1636 = vmul.f32 1.0, %v1635
    %v1637 = vrcp.pop %v1621
    %v1638 = vmul.f32 %v1621, %v1637
    %v1639 = vsub.f32 1.0, %v1638
    %v1640 = vmul.f32 %v1637, %v1639
    %v1641 = vadd.f32 %v1637, %v1640
    %vm1642 = vweird.f32 %v1621
    %vm1643 = vweird.f32 %v1637
    %vm1644 = vmor %vm1642, %vm1643
    %v1645 = vsel %vm1644, %v1637, %v1641
    %v1646 = vand.u32 2147483647, %v1621
    %vm1647 = vcmp.eq.f32.partialorder %v1646, 8.507059e+37
    %v1648 = vand.u32 %v1621, 2147483648
    %v1649 = vor.u32 1.1754944e-38, %v1648
    %v1650 = vsel %vm1647, %v1649, %v1645
    %v1651 = vmul.f32 1.0, %v1650
    %v1652 = vadd.f32 %v1568, %v757
    %v1653 = vadd.f32 %v1570, %v757
    %v1654 = vmul.f32 %v1596, %v1652
    %v1655 = vmul.f32 %v1611, %v1653
    %v1656 = vadd.f32 %v461, %v1654
    %v1657 = vadd.f32 %v463, %v1655
    %v1658 = vtanh.pop %v1656
    %v1659 = vtanh.pop %v1657
    %v1660 = vsub.f32 1.0, %v1636
    %v1661 = vsub.f32 1.0, %v1651
    %v1662 = vmul.f32 %v1660, %v1658
    %v1663 = vmul.f32 %v1661, %v1659
    %v1664 = vmul.f32 %v1636, %v1517
    %v1665 = vmul.f32 %v1651, %v1518
    %v1666 = vadd.f32 %v1662, %v1664
    %v1667 = vadd.f32 %v1663, %v1665
    %v1668 = vpack.c.bf16 %v1666, %v1666
    %v1669 = vpack.c.bf16 %v1667, %v1667
    %s1670 = scalar_lea.vmem [#allocation10], 48
    %1671 = vst [vmem:[%s1670] sm:$0xf] %v1668
    %1672 = vst [vmem:[%s1670 + $0x4] sm:$0xf] %v1669
    %v1675 = vunpack.c.l.b16 %v1668
    %v1676 = vunpack.c.l.b16 %v1669
    %v1677 = vpack.c.b16 %v1676, %v1675
    %1679 = vmatpush.bf16.msra.mxu0 %v607
    %1680 = vmatpush.bf16.msra.mxu0 %v604
    %1681 = vmatpush.bf16.msra.mxu0 %v601
    %1682 = vmatpush.bf16.msra.mxu0 %v598
    %1683 = vmatpush.bf16.msra.mxu0 %v595
    %1684 = vmatpush.bf16.msra.mxu0 %v592
    %1685 = vmatpush.bf16.msra.mxu0 %v589
    %1686 = vmatpush.bf16.msra.mxu0 %v586
    %1687 = vmatmul.bf16.gmra.mxu0 %v1677
    %v1688 = vpop.f32.mrf.mxu0
    %v1689 = vadd.f32 0.0, %v1688
    %v1690 = vpop.f32.mrf.mxu0
    %v1691 = vadd.f32 0.0, %v1690
    %1692 = vdwg.mxu0
    %1693 = vmatpush.bf16.msra.mxu0 %v608
    %1694 = vmatpush.bf16.msra.mxu0 %v605
    %1695 = vmatpush.bf16.msra.mxu0 %v602
    %1696 = vmatpush.bf16.msra.mxu0 %v599
    %1697 = vmatpush.bf16.msra.mxu0 %v596
    %1698 = vmatpush.bf16.msra.mxu0 %v593
    %1699 = vmatpush.bf16.msra.mxu0 %v590
    %1700 = vmatpush.bf16.msra.mxu0 %v587
    %1701 = vmatmul.bf16.gmra.mxu0 %v1677
    %v1702 = vpop.f32.mrf.mxu0
    %v1703 = vadd.f32 0.0, %v1702
    %v1704 = vpop.f32.mrf.mxu0
    %v1705 = vadd.f32 0.0, %v1704
    %1706 = vdwg.mxu0
    %1707 = vmatpush.bf16.msra.mxu0 %v609
    %1708 = vmatpush.bf16.msra.mxu0 %v606
    %1709 = vmatpush.bf16.msra.mxu0 %v603
    %1710 = vmatpush.bf16.msra.mxu0 %v600
    %1711 = vmatpush.bf16.msra.mxu0 %v597
    %1712 = vmatpush.bf16.msra.mxu0 %v594
    %1713 = vmatpush.bf16.msra.mxu0 %v591
    %1714 = vmatpush.bf16.msra.mxu0 %v588
    %1715 = vmatmul.bf16.gmra.mxu0 %v1677
    %v1716 = vpop.f32.mrf.mxu0
    %v1717 = vadd.f32 0.0, %v1716
    %v1718 = vpop.f32.mrf.mxu0
    %v1719 = vadd.f32 0.0, %v1718
    %1720 = vdwg.mxu0
    %v1721 = vadd.f32 %v368, %v1689
    %v1722 = vadd.f32 %v370, %v1691
    %v1723 = vxor.u32 %v1721, 2147483648
    %v1724 = vxor.u32 %v1722, 2147483648
    %v1725 = vmul.f32 %v1723, 1.442695
    %v1726 = vpow.pop %v1725
    %v1727 = vmul.f32 %v1724, 1.442695
    %v1728 = vpow.pop %v1727
    %v1729 = vadd.f32 %v1726, 1.0
    %v1730 = vadd.f32 %v1728, 1.0
    %v1731 = vrcp.pop %v1729
    %v1732 = vmul.f32 %v1729, %v1731
    %v1733 = vsub.f32 1.0, %v1732
    %v1734 = vmul.f32 %v1731, %v1733
    %v1735 = vadd.f32 %v1731, %v1734
    %vm1736 = vweird.f32 %v1729
    %vm1737 = vweird.f32 %v1731
    %vm1738 = vmor %vm1736, %vm1737
    %v1739 = vsel %vm1738, %v1731, %v1735
    %v1740 = vand.u32 2147483647, %v1729
    %vm1741 = vcmp.eq.f32.partialorder %v1740, 8.507059e+37
    %v1742 = vand.u32 %v1729, 2147483648
    %v1743 = vor.u32 1.1754944e-38, %v1742
    %v1744 = vsel %vm1741, %v1743, %v1739
    %v1745 = vmul.f32 1.0, %v1744
    %v1746 = vrcp.pop %v1730
    %v1747 = vmul.f32 %v1730, %v1746
    %v1748 = vsub.f32 1.0, %v1747
    %v1749 = vmul.f32 %v1746, %v1748
    %v1750 = vadd.f32 %v1746, %v1749
    %vm1751 = vweird.f32 %v1730
    %vm1752 = vweird.f32 %v1746
    %vm1753 = vmor %vm1751, %vm1752
    %v1754 = vsel %vm1753, %v1746, %v1750
    %v1755 = vand.u32 2147483647, %v1730
    %vm1756 = vcmp.eq.f32.partialorder %v1755, 8.507059e+37
    %v1757 = vand.u32 %v1730, 2147483648
    %v1758 = vor.u32 1.1754944e-38, %v1757
    %v1759 = vsel %vm1756, %v1758, %v1754
    %v1760 = vmul.f32 1.0, %v1759
    %v1761 = vadd.f32 %v417, %v1703
    %v1762 = vadd.f32 %v419, %v1705
    %v1763 = vxor.u32 %v1761, 2147483648
    %v1764 = vxor.u32 %v1762, 2147483648
    %v1765 = vmul.f32 %v1763, 1.442695
    %v1766 = vpow.pop %v1765
    %v1767 = vmul.f32 %v1764, 1.442695
    %v1768 = vpow.pop %v1767
    %v1769 = vadd.f32 %v1766, 1.0
    %v1770 = vadd.f32 %v1768, 1.0
    %v1771 = vrcp.pop %v1769
    %v1772 = vmul.f32 %v1769, %v1771
    %v1773 = vsub.f32 1.0, %v1772
    %v1774 = vmul.f32 %v1771, %v1773
    %v1775 = vadd.f32 %v1771, %v1774
    %vm1776 = vweird.f32 %v1769
    %vm1777 = vweird.f32 %v1771
    %vm1778 = vmor %vm1776, %vm1777
    %v1779 = vsel %vm1778, %v1771, %v1775
    %v1780 = vand.u32 2147483647, %v1769
    %vm1781 = vcmp.eq.f32.partialorder %v1780, 8.507059e+37
    %v1782 = vand.u32 %v1769, 2147483648
    %v1783 = vor.u32 1.1754944e-38, %v1782
    %v1784 = vsel %vm1781, %v1783, %v1779
    %v1785 = vmul.f32 1.0, %v1784
    %v1786 = vrcp.pop %v1770
    %v1787 = vmul.f32 %v1770, %v1786
    %v1788 = vsub.f32 1.0, %v1787
    %v1789 = vmul.f32 %v1786, %v1788
    %v1790 = vadd.f32 %v1786, %v1789
    %vm1791 = vweird.f32 %v1770
    %vm1792 = vweird.f32 %v1786
    %vm1793 = vmor %vm1791, %vm1792
    %v1794 = vsel %vm1793, %v1786, %v1790
    %v1795 = vand.u32 2147483647, %v1770
    %vm1796 = vcmp.eq.f32.partialorder %v1795, 8.507059e+37
    %v1797 = vand.u32 %v1770, 2147483648
    %v1798 = vor.u32 1.1754944e-38, %v1797
    %v1799 = vsel %vm1796, %v1798, %v1794
    %v1800 = vmul.f32 1.0, %v1799
    %v1801 = vadd.f32 %v1717, %v757
    %v1802 = vadd.f32 %v1719, %v757
    %v1803 = vmul.f32 %v1745, %v1801
    %v1804 = vmul.f32 %v1760, %v1802
    %v1805 = vadd.f32 %v466, %v1803
    %v1806 = vadd.f32 %v468, %v1804
    %v1807 = vtanh.pop %v1805
    %v1808 = vtanh.pop %v1806
    %v1809 = vsub.f32 1.0, %v1785
    %v1810 = vsub.f32 1.0, %v1800
    %v1811 = vmul.f32 %v1809, %v1807
    %v1812 = vmul.f32 %v1810, %v1808
    %v1813 = vmul.f32 %v1785, %v1666
    %v1814 = vmul.f32 %v1800, %v1667
    %v1815 = vadd.f32 %v1811, %v1813
    %v1816 = vadd.f32 %v1812, %v1814
    %v1817 = vpack.c.bf16 %v1815, %v1815
    %v1818 = vpack.c.bf16 %v1816, %v1816
    %s1819 = scalar_lea.vmem [#allocation10], 56
    %1820 = vst [vmem:[%s1819] sm:$0xf] %v1817
    %1821 = vst [vmem:[%s1819 + $0x4] sm:$0xf] %v1818
    %1822 = vst [vmem:[#allocation11] sm:$0xff] %v1815
    %1823 = vst [vmem:[#allocation11 + $0x8] sm:$0xff] %v1816
    // Predicated region
    $region42: #{tpu_custom_call.1} parent=1 // pred_check
      _
    $region43: #{tpu_custom_call.1} parent=1 // pred_check_branch
      %1825 = sbr.rel (0) target = $region45
    $region44: #{tpu_custom_call.1} parent=1 // pred_region
      %1827 = vsyncadd [#allocation4], 0
      %s1828 = sshll.u32 [#allocation10], 4
      %s1829 = int_to_ptr.vmem [resolvable:$true] %s1828
      %s1830 = sshll.u32 %s5, 4
      %s1831 = int_to_ptr.hbm [resolvable:$true] %s1830
      %1836 = dma.vmem_to_hbm [thread:$0]  %s1829, 1024, %s1831, [#allocation4], 64, 64, 4
    $region45: #{tpu_custom_call.1} parent=1 // pred_fallthru
      _
    // Predicated region
    $region46: #{tpu_custom_call.1} parent=1 // pred_check
      _
    $region47: #{tpu_custom_call.1} parent=1 // pred_check_branch
      %1838 = sbr.rel (0) target = $region49
    $region48: #{tpu_custom_call.1} parent=1 // pred_region
      %1840 = vsyncadd [#allocation12], 0
      %s1841 = sshll.u32 [#allocation11], 4
      %s1842 = int_to_ptr.vmem [resolvable:$true] %s1841
      %s1843 = sshll.u32 %s6, 4
      %s1844 = int_to_ptr.hbm [resolvable:$true] %s1843
      %1849 = dma.vmem_to_hbm [thread:$0]  %s1842, 256, %s1844, [#allocation12], 128, 128, 8
    $region49: #{tpu_custom_call.1} parent=1 // pred_fallthru
      _
    // Predicated region
    $region50: #{tpu_custom_call.1} parent=1 // pred_check
      _
    $region51: #{tpu_custom_call.1} parent=1 // pred_check_branch
      %1851 = sbr.rel (0) target = $region53
    $region52: #{tpu_custom_call.1} parent=1 // pred_region
      %1853 = dma.done [#allocation4], 1024
    $region53: #{tpu_custom_call.1} parent=1 // pred_fallthru
      _
    // Predicated region
    $region54: #{tpu_custom_call.1} parent=1 // pred_check
      _
    $region55: #{tpu_custom_call.1} parent=1 // pred_check_branch
      %1855 = sbr.rel (0) target = $region57
    $region56: #{tpu_custom_call.1} parent=1 // pred_region
      %1857 = dma.done [#allocation12], 256
    $region57: #{tpu_custom_call.1} parent=1 // pred_fallthru
      _
    %1858 = vsyncpa [#allocation3], 1
    %1859 = vsyncpa [#allocation6], 1
    %1860 = vsyncpa [#allocation9], 1
    %1861 = vsyncpa [#allocation4], 1
    %1862 = vsyncpa [#allocation12], 1

</llo_original>
